<compile_context>
chip_gen: v7x
topology: tpu7x:2x2x1
jax: 0.10.0
libtpu: 0.0.40
codegen_flags: <defaults>
</compile_context>

<pallas_src>
import jax
import jax.numpy as jnp
from jax.experimental import pallas as pl
from jax.experimental.pallas import tpu as pltpu

EPS = 1e-5
LANES = 128


def _round_up(x, m):
    return ((x + m - 1) // m) * m


# --------------------------------------------------------------------------- #
# Kernel
# --------------------------------------------------------------------------- #
def generator_kernel(noise_ref,
                     w1, g1, be1,
                     w2, g2, be2,
                     w3, g3, be3,
                     w4, g4, be4,
                     w5, b5,
                     out_ref):
    """Fused MLP generator: 4x (Linear + BatchNorm1d + ReLU) then Linear + Sigmoid.

    All operands are full-array VMEM refs; BN statistics therefore see the whole
    (group-)batch, matching PyTorch training-mode BatchNorm1d.
    """

    def gen_block(x_bf16, w_ref, g_ref, be_ref):
        # Linear on the MXU (bias omitted: cancels exactly under the BN mean
        # subtraction that follows); f32 accumulation.
        h = jnp.dot(x_bf16, w_ref[...], preferred_element_type=jnp.float32)

        # One-pass batch statistics (f32): mean and E[h^2] over the batch axis.
        mean = jnp.mean(h, axis=0, keepdims=True)
        msq = jnp.mean(h * h, axis=0, keepdims=True)
        var = jnp.maximum(msq - mean * mean, 0.0)

        # Fold BN affine into a single FMA: y = h * scale + shift.
        scale = g_ref[...] * jax.lax.rsqrt(var + EPS)      # (1, N), gamma folded
        shift = be_ref[...] - mean * scale                  # (1, N)
        y = h * scale + shift

        # ReLU, then bf16 for the next MXU matmul.
        return jnp.maximum(y, 0.0).astype(jnp.bfloat16)

    x = noise_ref[...]                                       # already bf16
    x = gen_block(x, w1, g1, be1)
    x = gen_block(x, w2, g2, be2)
    x = gen_block(x, w3, g3, be3)
    x = gen_block(x, w4, g4, be4)

    # Final layer: Linear + Sigmoid.  sigmoid(x) == 0.5*(tanh(x/2)+1): EUP op,
    # exactly bounded in [0, 1].
    logits = jnp.dot(x, w5[...], preferred_element_type=jnp.float32) + b5[...]
    out_ref[...] = (0.5 * (jnp.tanh(0.5 * logits) + 1.0)).astype(out_ref.dtype)


# --------------------------------------------------------------------------- #
# Parameter packing (one-time, outside the hot path)
# --------------------------------------------------------------------------- #
def prepare_params(params):
    """Pre-cast weights to bf16 and zero-pad feature dims to multiples of 128.

    params = [(w, b, gamma, beta) x 4, (w, b)] with w: (in, out), vectors (1, out).
    The 4 Linear biases are dropped (exactly cancelled by BN mean subtraction).
    Gamma/beta/final-bias stay f32 (BN statistics math stays in f32).
    """
    (w1, _b1, g1, be1), (w2, _b2, g2, be2), \
        (w3, _b3, g3, be3), (w4, _b4, g4, be4), (w5, b5) = params

    d = [w1.shape[0], w1.shape[1], w2.shape[1], w3.shape[1], w4.shape[1], w5.shape[1]]
    p = [_round_up(x, LANES) for x in d]

    def pw(w, pi, po):   # weight: zero-pad then bf16
        return jnp.pad(w, ((0, pi - w.shape[0]), (0, po - w.shape[1]))).astype(jnp.bfloat16)

    def pv(v, po):       # (1, out) f32 vector: zero-pad
        return jnp.pad(v, ((0, 0), (0, po - v.shape[1])))

    packed = (
        pw(w1, p[0], p[1]), pv(g1, p[1]), pv(be1, p[1]),
        pw(w2, p[1], p[2]), pv(g2, p[2]), pv(be2, p[2]),
        pw(w3, p[2], p[3]), pv(g3, p[3]), pv(be3, p[3]),
        pw(w4, p[3], p[4]), pv(g4, p[4]), pv(be4, p[4]),
        pw(w5, p[4], p[5]), pv(b5, p[5]),
    )
    meta = dict(noise_dim=d[0], padded_noise_dim=p[0],
                im_dim=d[5], padded_im_dim=p[5])
    return packed, meta


# --------------------------------------------------------------------------- #
# Forward wrapper
# --------------------------------------------------------------------------- #
def generator_forward(noise, packed, meta, *, batch_group=None,
                      out_dtype=jnp.bfloat16):
    """Run the fused generator.

    batch_group=None  -> single fully VMEM-resident call (latency path).
    batch_group=G     -> grid over independent G-sample batches ("parallel"
                         axis: both TCs on v7x; weights stay VMEM-resident via
                         constant block index).  BN stats are per group, i.e.
                         each group corresponds to one PyTorch forward batch.
    """
    n = noise.shape[0]
    pin, pout = meta["padded_noise_dim"], meta["padded_im_dim"]

    # Pad + cast noise once (zero columns are mathematically inert).
    x = jnp.pad(noise, ((0, 0), (0, pin - noise.shape[1]))).astype(jnp.bfloat16)

    out_shape = jax.ShapeDtypeStruct((n, pout), out_dtype)

    if batch_group is None or batch_group >= n:
        # No grid: every operand is a full-array VMEM block.
        vmem = pl.BlockSpec(memory_space=pltpu.MemorySpace.VMEM)
        out = pl.pallas_call(
            generator_kernel,
            out_shape=out_shape,
            in_specs=[vmem] * (1 + len(packed)),
            out_specs=vmem,
        )(x, *packed)
    else:
        assert n % batch_group == 0, "batch must be divisible by batch_group"
        num_groups = n // batch_group

        def const_spec(a):
            # Constant block index -> operand DMA'd once, resident across steps.
            return pl.BlockSpec(a.shape, lambda g: (0,) * a.ndim)

        in_specs = ([pl.BlockSpec((batch_group, pin), lambda g: (g, 0))]
                    + [const_spec(a) for a in packed])
        out = pl.pallas_call(
            generator_kernel,
            out_shape=out_shape,
            grid=(num_groups,),
            in_specs=in_specs,
            out_specs=pl.BlockSpec((batch_group, pout), lambda g: (g, 0)),
            compiler_params=pltpu.CompilerParams(
                dimension_semantics=("parallel",)),
        )(x, *packed)

    if pout != meta["im_dim"]:
        out = out[:, :meta["im_dim"]]
    return out


# --------------------------------------------------------------------------- #
# Init + pure-JAX reference (for correctness check)
# --------------------------------------------------------------------------- #
def init_params(key, noise_dim, im_dim, hidden_layer):
    """Deterministic init mirroring the PyTorch module's layer shapes.

    Linear: U(-1/sqrt(fan_in), 1/sqrt(fan_in)) for W and b (PyTorch default).
    BatchNorm1d: gamma = 1, beta = 0.  Weights stored as (in, out).
    """
    dims = [noise_dim, hidden_layer, hidden_layer * 2,
            hidden_layer * 4, hidden_layer * 8, im_dim]
    params = []
    for i in range(5):
        fan_in, fan_out = dims[i], dims[i + 1]
        key, kw, kb = jax.random.split(key, 3)
        bound = 1.0 / jnp.sqrt(fan_in)
        w = jax.random.uniform(kw, (fan_in, fan_out), jnp.float32, -bound, bound)
        b = jax.random.uniform(kb, (1, fan_out), jnp.float32, -bound, bound)
        if i < 4:
            params.append((w, b, jnp.ones((1, fan_out), jnp.float32),
                           jnp.zeros((1, fan_out), jnp.float32)))
        else:
            params.append((w, b))
    return params


def generator_reference(noise, params):
    """Plain-JAX f32 reference of the PyTorch forward (training-mode BN)."""
    x = noise
    for i, layer in enumerate(params):
        if i < 4:
            w, b, g, be = layer
            h = x @ w + b
            mean = h.mean(axis=0, keepdims=True)
            var = ((h - mean) ** 2).mean(axis=0, keepdims=True)   # biased, as torch
            h = (h - mean) * jax.lax.rsqrt(var + EPS) * g + be
            x = jnp.maximum(h, 0.0)
        else:
            w, b = layer
            x = jax.nn.sigmoid(x @ w + b)
    return x


# --------------------------------------------------------------------------- #
if __name__ == "__main__":
    # Shapes consistent with Generator(noise_dim, im_dim, hidden_layer).
    batch = 128
    noise_dim = 64
    hidden_layer = 32      # hidden dims: 32 -> 64 -> 128 -> 256
    im_dim = 256           # lane-dense output (multiple of 128)

    key = jax.random.PRNGKey(0)
    key, knoise = jax.random.split(key)
    params = init_params(key, noise_dim, im_dim, hidden_layer)
    noise = jax.random.normal(knoise, (batch, noise_dim), jnp.float32)

    packed, meta = prepare_params(params)

    # ---- single-batch latency path (no grid) -------------------------------
    out = generator_forward(noise, packed, meta)
    out = jax.block_until_ready(out)
    assert out.shape == (batch, im_dim)
    assert bool(jnp.all(jnp.isfinite(out)))
    assert bool(jnp.all((out >= 0.0) & (out <= 1.0)))     # sigmoid output range

    # Correctness vs pure-JAX f32 reference (bf16 weights/activations -> loose tol).
    ref = generator_reference(noise, params)
    max_err = float(jnp.max(jnp.abs(out.astype(jnp.float32) - ref)))
    assert max_err < 5e-2, f"max abs error vs reference: {max_err}"

    # ---- multi-batch throughput path (parallel grid over batch groups) -----
    out_g = generator_forward(noise, packed, meta, batch_group=64)
    out_g = jax.block_until_ready(out_g)
    assert out_g.shape == (batch, im_dim)
    assert bool(jnp.all(jnp.isfinite(out_g)))
    assert bool(jnp.all((out_g >= 0.0) & (out_g <= 1.0)))

    print("KERNEL_OK")
</pallas_src>

<mosaic_0001>
module attributes {stable_mosaic.version = 11 : i64} {
  func.func @generator_kernel(%arg0: memref<128x128xbf16, #tpu.memory_space<vmem>>, %arg1: memref<128x128xbf16, #tpu.memory_space<vmem>>, %arg2: memref<1x128xf32, #tpu.memory_space<vmem>>, %arg3: memref<1x128xf32, #tpu.memory_space<vmem>>, %arg4: memref<128x128xbf16, #tpu.memory_space<vmem>>, %arg5: memref<1x128xf32, #tpu.memory_space<vmem>>, %arg6: memref<1x128xf32, #tpu.memory_space<vmem>>, %arg7: memref<128x128xbf16, #tpu.memory_space<vmem>>, %arg8: memref<1x128xf32, #tpu.memory_space<vmem>>, %arg9: memref<1x128xf32, #tpu.memory_space<vmem>>, %arg10: memref<128x256xbf16, #tpu.memory_space<vmem>>, %arg11: memref<1x256xf32, #tpu.memory_space<vmem>>, %arg12: memref<1x256xf32, #tpu.memory_space<vmem>>, %arg13: memref<256x256xbf16, #tpu.memory_space<vmem>>, %arg14: memref<1x256xf32, #tpu.memory_space<vmem>>, %arg15: memref<128x256xbf16, #tpu.memory_space<vmem>>) attributes {dimension_semantics = [], scalar_prefetch = 0 : i64, scratch_operands = 0 : i64, tpu.core_type = #tpu.core_type<tc>} {
    %c0 = arith.constant 0 : index
    %c0_0 = arith.constant 0 : index
    %0 = vector.load %arg0[%c0, %c0_0] : memref<128x128xbf16, #tpu.memory_space<vmem>>, vector<128x128xbf16>
    %c0_1 = arith.constant 0 : index
    %c0_2 = arith.constant 0 : index
    %1 = vector.load %arg1[%c0_1, %c0_2] : memref<128x128xbf16, #tpu.memory_space<vmem>>, vector<128x128xbf16>
    %cst = arith.constant dense<0.000000e+00> : vector<128x128xf32>
    %2 = tpu.matmul %0, %1, %cst {dimension_numbers = #tpu.dot_dimension_numbers<[1], [0], [0], [1], [0, 0, 1, 1], [], []>} : vector<128x128xbf16>, vector<128x128xbf16>, vector<128x128xf32> -> vector<128x128xf32>
    %cst_3 = arith.constant dense<0.000000e+00> : vector<128xf32>
    %3 = vector.multi_reduction <add>, %2, %cst_3 [0] : vector<128x128xf32> to vector<128xf32>
    %4 = vector.shape_cast %3 : vector<128xf32> to vector<1x128xf32>
    %cst_4 = arith.constant 1.280000e+02 : f32
    %5 = vector.broadcast %cst_4 : f32 to vector<1x128xf32>
    %6 = arith.divf %4, %5 : vector<1x128xf32>
    %7 = arith.mulf %2, %2 : vector<128x128xf32>
    %cst_5 = arith.constant dense<0.000000e+00> : vector<128xf32>
    %8 = vector.multi_reduction <add>, %7, %cst_5 [0] : vector<128x128xf32> to vector<128xf32>
    %9 = vector.shape_cast %8 : vector<128xf32> to vector<1x128xf32>
    %cst_6 = arith.constant 1.280000e+02 : f32
    %10 = vector.broadcast %cst_6 : f32 to vector<1x128xf32>
    %11 = arith.divf %9, %10 : vector<1x128xf32>
    %12 = arith.mulf %6, %6 : vector<1x128xf32>
    %13 = arith.subf %11, %12 : vector<1x128xf32>
    %cst_7 = arith.constant 0.000000e+00 : f32
    %14 = vector.broadcast %cst_7 : f32 to vector<1x128xf32>
    %15 = arith.maximumf %13, %14 : vector<1x128xf32>
    %c0_8 = arith.constant 0 : index
    %c0_9 = arith.constant 0 : index
    %16 = vector.load %arg2[%c0_8, %c0_9] : memref<1x128xf32, #tpu.memory_space<vmem>>, vector<1x128xf32>
    %cst_10 = arith.constant 9.99999974E-6 : f32
    %17 = vector.broadcast %cst_10 : f32 to vector<1x128xf32>
    %18 = arith.addf %15, %17 : vector<1x128xf32>
    %19 = math.rsqrt %18 : vector<1x128xf32>
    %20 = arith.mulf %16, %19 : vector<1x128xf32>
    %c0_11 = arith.constant 0 : index
    %c0_12 = arith.constant 0 : index
    %21 = vector.load %arg3[%c0_11, %c0_12] : memref<1x128xf32, #tpu.memory_space<vmem>>, vector<1x128xf32>
    %22 = arith.mulf %6, %20 : vector<1x128xf32>
    %23 = arith.subf %21, %22 : vector<1x128xf32>
    %24 = vector.broadcast %20 : vector<1x128xf32> to vector<128x128xf32>
    %25 = arith.mulf %2, %24 : vector<128x128xf32>
    %26 = vector.broadcast %23 : vector<1x128xf32> to vector<128x128xf32>
    %27 = arith.addf %25, %26 : vector<128x128xf32>
    %cst_13 = arith.constant 0.000000e+00 : f32
    %28 = vector.broadcast %cst_13 : f32 to vector<128x128xf32>
    %29 = arith.maximumf %27, %28 : vector<128x128xf32>
    %30 = arith.truncf %29 : vector<128x128xf32> to vector<128x128xbf16>
    %c0_14 = arith.constant 0 : index
    %c0_15 = arith.constant 0 : index
    %31 = vector.load %arg4[%c0_14, %c0_15] : memref<128x128xbf16, #tpu.memory_space<vmem>>, vector<128x128xbf16>
    %cst_16 = arith.constant dense<0.000000e+00> : vector<128x128xf32>
    %32 = tpu.matmul %30, %31, %cst_16 {dimension_numbers = #tpu.dot_dimension_numbers<[1], [0], [0], [1], [0, 0, 1, 1], [], []>} : vector<128x128xbf16>, vector<128x128xbf16>, vector<128x128xf32> -> vector<128x128xf32>
    %cst_17 = arith.constant dense<0.000000e+00> : vector<128xf32>
    %33 = vector.multi_reduction <add>, %32, %cst_17 [0] : vector<128x128xf32> to vector<128xf32>
    %34 = vector.shape_cast %33 : vector<128xf32> to vector<1x128xf32>
    %cst_18 = arith.constant 1.280000e+02 : f32
    %35 = vector.broadcast %cst_18 : f32 to vector<1x128xf32>
    %36 = arith.divf %34, %35 : vector<1x128xf32>
    %37 = arith.mulf %32, %32 : vector<128x128xf32>
    %cst_19 = arith.constant dense<0.000000e+00> : vector<128xf32>
    %38 = vector.multi_reduction <add>, %37, %cst_19 [0] : vector<128x128xf32> to vector<128xf32>
    %39 = vector.shape_cast %38 : vector<128xf32> to vector<1x128xf32>
    %cst_20 = arith.constant 1.280000e+02 : f32
    %40 = vector.broadcast %cst_20 : f32 to vector<1x128xf32>
    %41 = arith.divf %39, %40 : vector<1x128xf32>
    %42 = arith.mulf %36, %36 : vector<1x128xf32>
    %43 = arith.subf %41, %42 : vector<1x128xf32>
    %cst_21 = arith.constant 0.000000e+00 : f32
    %44 = vector.broadcast %cst_21 : f32 to vector<1x128xf32>
    %45 = arith.maximumf %43, %44 : vector<1x128xf32>
    %c0_22 = arith.constant 0 : index
    %c0_23 = arith.constant 0 : index
    %46 = vector.load %arg5[%c0_22, %c0_23] : memref<1x128xf32, #tpu.memory_space<vmem>>, vector<1x128xf32>
    %cst_24 = arith.constant 9.99999974E-6 : f32
    %47 = vector.broadcast %cst_24 : f32 to vector<1x128xf32>
    %48 = arith.addf %45, %47 : vector<1x128xf32>
    %49 = math.rsqrt %48 : vector<1x128xf32>
    %50 = arith.mulf %46, %49 : vector<1x128xf32>
    %c0_25 = arith.constant 0 : index
    %c0_26 = arith.constant 0 : index
    %51 = vector.load %arg6[%c0_25, %c0_26] : memref<1x128xf32, #tpu.memory_space<vmem>>, vector<1x128xf32>
    %52 = arith.mulf %36, %50 : vector<1x128xf32>
    %53 = arith.subf %51, %52 : vector<1x128xf32>
    %54 = vector.broadcast %50 : vector<1x128xf32> to vector<128x128xf32>
    %55 = arith.mulf %32, %54 : vector<128x128xf32>
    %56 = vector.broadcast %53 : vector<1x128xf32> to vector<128x128xf32>
    %57 = arith.addf %55, %56 : vector<128x128xf32>
    %cst_27 = arith.constant 0.000000e+00 : f32
    %58 = vector.broadcast %cst_27 : f32 to vector<128x128xf32>
    %59 = arith.maximumf %57, %58 : vector<128x128xf32>
    %60 = arith.truncf %59 : vector<128x128xf32> to vector<128x128xbf16>
    %c0_28 = arith.constant 0 : index
    %c0_29 = arith.constant 0 : index
    %61 = vector.load %arg7[%c0_28, %c0_29] : memref<128x128xbf16, #tpu.memory_space<vmem>>, vector<128x128xbf16>
    %cst_30 = arith.constant dense<0.000000e+00> : vector<128x128xf32>
    %62 = tpu.matmul %60, %61, %cst_30 {dimension_numbers = #tpu.dot_dimension_numbers<[1], [0], [0], [1], [0, 0, 1, 1], [], []>} : vector<128x128xbf16>, vector<128x128xbf16>, vector<128x128xf32> -> vector<128x128xf32>
    %cst_31 = arith.constant dense<0.000000e+00> : vector<128xf32>
    %63 = vector.multi_reduction <add>, %62, %cst_31 [0] : vector<128x128xf32> to vector<128xf32>
    %64 = vector.shape_cast %63 : vector<128xf32> to vector<1x128xf32>
    %cst_32 = arith.constant 1.280000e+02 : f32
    %65 = vector.broadcast %cst_32 : f32 to vector<1x128xf32>
    %66 = arith.divf %64, %65 : vector<1x128xf32>
    %67 = arith.mulf %62, %62 : vector<128x128xf32>
    %cst_33 = arith.constant dense<0.000000e+00> : vector<128xf32>
    %68 = vector.multi_reduction <add>, %67, %cst_33 [0] : vector<128x128xf32> to vector<128xf32>
    %69 = vector.shape_cast %68 : vector<128xf32> to vector<1x128xf32>
    %cst_34 = arith.constant 1.280000e+02 : f32
    %70 = vector.broadcast %cst_34 : f32 to vector<1x128xf32>
    %71 = arith.divf %69, %70 : vector<1x128xf32>
    %72 = arith.mulf %66, %66 : vector<1x128xf32>
    %73 = arith.subf %71, %72 : vector<1x128xf32>
    %cst_35 = arith.constant 0.000000e+00 : f32
    %74 = vector.broadcast %cst_35 : f32 to vector<1x128xf32>
    %75 = arith.maximumf %73, %74 : vector<1x128xf32>
    %c0_36 = arith.constant 0 : index
    %c0_37 = arith.constant 0 : index
    %76 = vector.load %arg8[%c0_36, %c0_37] : memref<1x128xf32, #tpu.memory_space<vmem>>, vector<1x128xf32>
    %cst_38 = arith.constant 9.99999974E-6 : f32
    %77 = vector.broadcast %cst_38 : f32 to vector<1x128xf32>
    %78 = arith.addf %75, %77 : vector<1x128xf32>
    %79 = math.rsqrt %78 : vector<1x128xf32>
    %80 = arith.mulf %76, %79 : vector<1x128xf32>
    %c0_39 = arith.constant 0 : index
    %c0_40 = arith.constant 0 : index
    %81 = vector.load %arg9[%c0_39, %c0_40] : memref<1x128xf32, #tpu.memory_space<vmem>>, vector<1x128xf32>
    %82 = arith.mulf %66, %80 : vector<1x128xf32>
    %83 = arith.subf %81, %82 : vector<1x128xf32>
    %84 = vector.broadcast %80 : vector<1x128xf32> to vector<128x128xf32>
    %85 = arith.mulf %62, %84 : vector<128x128xf32>
    %86 = vector.broadcast %83 : vector<1x128xf32> to vector<128x128xf32>
    %87 = arith.addf %85, %86 : vector<128x128xf32>
    %cst_41 = arith.constant 0.000000e+00 : f32
    %88 = vector.broadcast %cst_41 : f32 to vector<128x128xf32>
    %89 = arith.maximumf %87, %88 : vector<128x128xf32>
    %90 = arith.truncf %89 : vector<128x128xf32> to vector<128x128xbf16>
    %c0_42 = arith.constant 0 : index
    %c0_43 = arith.constant 0 : index
    %91 = vector.load %arg10[%c0_42, %c0_43] : memref<128x256xbf16, #tpu.memory_space<vmem>>, vector<128x256xbf16>
    %cst_44 = arith.constant dense<0.000000e+00> : vector<128x256xf32>
    %92 = tpu.matmul %90, %91, %cst_44 {dimension_numbers = #tpu.dot_dimension_numbers<[1], [0], [0], [1], [0, 0, 1, 1], [], []>} : vector<128x128xbf16>, vector<128x256xbf16>, vector<128x256xf32> -> vector<128x256xf32>
    %cst_45 = arith.constant dense<0.000000e+00> : vector<256xf32>
    %93 = vector.multi_reduction <add>, %92, %cst_45 [0] : vector<128x256xf32> to vector<256xf32>
    %94 = vector.shape_cast %93 : vector<256xf32> to vector<1x256xf32>
    %cst_46 = arith.constant 1.280000e+02 : f32
    %95 = vector.broadcast %cst_46 : f32 to vector<1x256xf32>
    %96 = arith.divf %94, %95 : vector<1x256xf32>
    %97 = arith.mulf %92, %92 : vector<128x256xf32>
    %cst_47 = arith.constant dense<0.000000e+00> : vector<256xf32>
    %98 = vector.multi_reduction <add>, %97, %cst_47 [0] : vector<128x256xf32> to vector<256xf32>
    %99 = vector.shape_cast %98 : vector<256xf32> to vector<1x256xf32>
    %cst_48 = arith.constant 1.280000e+02 : f32
    %100 = vector.broadcast %cst_48 : f32 to vector<1x256xf32>
    %101 = arith.divf %99, %100 : vector<1x256xf32>
    %102 = arith.mulf %96, %96 : vector<1x256xf32>
    %103 = arith.subf %101, %102 : vector<1x256xf32>
    %cst_49 = arith.constant 0.000000e+00 : f32
    %104 = vector.broadcast %cst_49 : f32 to vector<1x256xf32>
    %105 = arith.maximumf %103, %104 : vector<1x256xf32>
    %c0_50 = arith.constant 0 : index
    %c0_51 = arith.constant 0 : index
    %106 = vector.load %arg11[%c0_50, %c0_51] : memref<1x256xf32, #tpu.memory_space<vmem>>, vector<1x256xf32>
    %cst_52 = arith.constant 9.99999974E-6 : f32
    %107 = vector.broadcast %cst_52 : f32 to vector<1x256xf32>
    %108 = arith.addf %105, %107 : vector<1x256xf32>
    %109 = math.rsqrt %108 : vector<1x256xf32>
    %110 = arith.mulf %106, %109 : vector<1x256xf32>
    %c0_53 = arith.constant 0 : index
    %c0_54 = arith.constant 0 : index
    %111 = vector.load %arg12[%c0_53, %c0_54] : memref<1x256xf32, #tpu.memory_space<vmem>>, vector<1x256xf32>
    %112 = arith.mulf %96, %110 : vector<1x256xf32>
    %113 = arith.subf %111, %112 : vector<1x256xf32>
    %114 = vector.broadcast %110 : vector<1x256xf32> to vector<128x256xf32>
    %115 = arith.mulf %92, %114 : vector<128x256xf32>
    %116 = vector.broadcast %113 : vector<1x256xf32> to vector<128x256xf32>
    %117 = arith.addf %115, %116 : vector<128x256xf32>
    %cst_55 = arith.constant 0.000000e+00 : f32
    %118 = vector.broadcast %cst_55 : f32 to vector<128x256xf32>
    %119 = arith.maximumf %117, %118 : vector<128x256xf32>
    %120 = arith.truncf %119 : vector<128x256xf32> to vector<128x256xbf16>
    %c0_56 = arith.constant 0 : index
    %c0_57 = arith.constant 0 : index
    %121 = vector.load %arg13[%c0_56, %c0_57] : memref<256x256xbf16, #tpu.memory_space<vmem>>, vector<256x256xbf16>
    %cst_58 = arith.constant dense<0.000000e+00> : vector<128x256xf32>
    %122 = tpu.matmul %120, %121, %cst_58 {dimension_numbers = #tpu.dot_dimension_numbers<[1], [0], [0], [1], [0, 0, 1, 1], [], []>} : vector<128x256xbf16>, vector<256x256xbf16>, vector<128x256xf32> -> vector<128x256xf32>
    %c0_59 = arith.constant 0 : index
    %c0_60 = arith.constant 0 : index
    %123 = vector.load %arg14[%c0_59, %c0_60] : memref<1x256xf32, #tpu.memory_space<vmem>>, vector<1x256xf32>
    %124 = vector.broadcast %123 : vector<1x256xf32> to vector<128x256xf32>
    %125 = arith.addf %122, %124 : vector<128x256xf32>
    %cst_61 = arith.constant 5.000000e-01 : f32
    %126 = vector.broadcast %cst_61 : f32 to vector<128x256xf32>
    %127 = arith.mulf %126, %125 : vector<128x256xf32>
    %128 = math.tanh %127 : vector<128x256xf32>
    %cst_62 = arith.constant 1.000000e+00 : f32
    %129 = vector.broadcast %cst_62 : f32 to vector<128x256xf32>
    %130 = arith.addf %128, %129 : vector<128x256xf32>
    %cst_63 = arith.constant 5.000000e-01 : f32
    %131 = vector.broadcast %cst_63 : f32 to vector<128x256xf32>
    %132 = arith.mulf %131, %130 : vector<128x256xf32>
    %133 = arith.truncf %132 : vector<128x256xf32> to vector<128x256xbf16>
    %c0_64 = arith.constant 0 : index
    %c0_65 = arith.constant 0 : index
    %134 = vector.load %arg15[%c0_64, %c0_65] : memref<128x256xbf16, #tpu.memory_space<vmem>>, vector<128x256xbf16>
    tpu.vector_store %arg15[%c0_64, %c0_65], %133 {strides = array<i32>} : memref<128x256xbf16, #tpu.memory_space<vmem>>, vector<128x256xbf16>,
    return
  }
}

</mosaic_0001>

<llo_original>
// kernel: tpu_custom_call.1
$region0: #{tpu_custom_call.1}
  #allocation0 [shape = 'u32[]', space=smem, size = 0x4, offset = 0x4, fixed_abs, tag = 'smem constant byte address 0x4 - core index']
  #allocation1 [shape = 'u32[144,128]{1,0:T(1,128)}', space=vmem, size = 0x12000, scoped, tag = 'internal scratch']
  %s0 = inlined_call_operand.hbm [shape: bf16[128,128], index: 0, kind: input, shape index: {}]
  %s1 = inlined_call_operand.hbm [shape: bf16[128,128], index: 1, kind: input, shape index: {}]
  %s2 = inlined_call_operand.vmem [shape: f32[1,128], index: 2, kind: input, shape index: {}]
  %s3 = inlined_call_operand.vmem [shape: f32[1,128], index: 3, kind: input, shape index: {}]
  %s4 = inlined_call_operand.hbm [shape: bf16[128,128], index: 4, kind: input, shape index: {}]
  %s5 = inlined_call_operand.vmem [shape: f32[1,128], index: 5, kind: input, shape index: {}]
  %s6 = inlined_call_operand.vmem [shape: f32[1,128], index: 6, kind: input, shape index: {}]
  %s7 = inlined_call_operand.hbm [shape: bf16[128,128], index: 7, kind: input, shape index: {}]
  %s8 = inlined_call_operand.vmem [shape: f32[1,128], index: 8, kind: input, shape index: {}]
  %s9 = inlined_call_operand.vmem [shape: f32[1,128], index: 9, kind: input, shape index: {}]
  %s10 = inlined_call_operand.hbm [shape: bf16[128,256], index: 10, kind: input, shape index: {}]
  %s11 = inlined_call_operand.vmem [shape: f32[1,256], index: 11, kind: input, shape index: {}]
  %s12 = inlined_call_operand.vmem [shape: f32[1,256], index: 12, kind: input, shape index: {}]
  %s13 = inlined_call_operand.hbm [shape: bf16[256,256], index: 13, kind: input, shape index: {}]
  %s14 = inlined_call_operand.vmem [shape: f32[1,256], index: 14, kind: input, shape index: {}]
  %s15 = inlined_call_operand.hbm [shape: bf16[128,256], index: 15, kind: output, shape index: {}]
  %s16 = sld [smem:[#allocation0]]
  $region94: #{tpu_custom_call.1} parent=0
    _
  %s18 = ssub.s32 1, %s16
  %s19 = scalar_select 0, %s18, %s16
  $region1: #{tpu_custom_call.1} parent=0
    #allocation2 [shape = 'u8[32768]{0}', space=vmem, size = 0x8000, scoped, tag = 'input window, operand 0, single buffered']
    #allocation3 [shape = 's32[1]{0}', space=sflag, size = 0x4, scoped, tag = 'scoped memory for tpu_custom_call.1']
    #allocation4 [shape = 's32[1]{0}', space=sflag, size = 0x4, scoped, tag = 'scoped memory for tpu_custom_call.1']
    #allocation5 [shape = 'u8[32768]{0}', space=vmem, size = 0x8000, scoped, tag = 'input window, operand 1, single buffered']
    #allocation6 [shape = 's32[1]{0}', space=sflag, size = 0x4, scoped, tag = 'scoped memory for tpu_custom_call.1']
    #allocation7 [shape = 'u8[32768]{0}', space=vmem, size = 0x8000, scoped, tag = 'input window, operand 4, single buffered']
    #allocation8 [shape = 'u8[32768]{0}', space=vmem, size = 0x8000, scoped, tag = 'input window, operand 7, single buffered']
    #allocation9 [shape = 's32[1]{0}', space=sflag, size = 0x4, scoped, tag = 'scoped memory for tpu_custom_call.1']
    #allocation10 [shape = 'u8[65536]{0}', space=vmem, size = 0x10000, scoped, tag = 'input window, operand 10, single buffered']
    #allocation11 [shape = 'u8[131072]{0}', space=vmem, size = 0x20000, scoped, tag = 'input window, operand 13, single buffered']
    #allocation12 [shape = 's32[1]{0}', space=sflag, size = 0x4, scoped, tag = 'scoped memory for tpu_custom_call.1']
    #allocation13 [shape = 'u8[65536]{0}', space=vmem, size = 0x10000, scoped, tag = 'output window, operand 0, single buffered']
    %20 = vsyncpa [#allocation3], 0
    %21 = vsyncpa [#allocation6], 0
    %22 = vsyncpa [#allocation9], 0
    %23 = vsyncpa [#allocation12], 0
    %24 = vsyncpa [#allocation4], 0
    // Predicated region
    $region2: #{tpu_custom_call.1} parent=1 // pred_check
      _
    $region3: #{tpu_custom_call.1} parent=1 // pred_check_branch
      %26 = sbr.rel (0) target = $region5
    $region4: #{tpu_custom_call.1} parent=1 // pred_region
      %s28 = ssub.s32 1024, 1024
      %29 = vsyncadd [#allocation3], %s28
      %s30 = sshll.u32 [#allocation2], 4
      %s31 = int_to_ptr.vmem [resolvable:$true] %s30
      %36 = dma.hbm_to_vmem [thread:$0]  %s0, 1024, %s31, [#allocation3], 64, 64, 4
    $region5: #{tpu_custom_call.1} parent=1 // pred_fallthru
      _
    // Predicated region
    $region6: #{tpu_custom_call.1} parent=1 // pred_check
      _
    $region7: #{tpu_custom_call.1} parent=1 // pred_check_branch
      %38 = sbr.rel (0) target = $region9
    $region8: #{tpu_custom_call.1} parent=1 // pred_region
      %s40 = ssub.s32 1024, 1024
      %41 = vsyncadd [#allocation6], %s40
      %s42 = sshll.u32 [#allocation5], 4
      %s43 = int_to_ptr.vmem [resolvable:$true] %s42
      %48 = dma.hbm_to_vmem [thread:$0]  %s1, 1024, %s43, [#allocation6], 64, 64, 4
    $region9: #{tpu_custom_call.1} parent=1 // pred_fallthru
      _
    // Predicated region
    $region10: #{tpu_custom_call.1} parent=1 // pred_check
      _
    $region11: #{tpu_custom_call.1} parent=1 // pred_check_branch
      %50 = sbr.rel (0) target = $region13
    $region12: #{tpu_custom_call.1} parent=1 // pred_region
      _
    $region13: #{tpu_custom_call.1} parent=1 // pred_fallthru
      _
    // Predicated region
    $region14: #{tpu_custom_call.1} parent=1 // pred_check
      _
    $region15: #{tpu_custom_call.1} parent=1 // pred_check_branch
      %52 = sbr.rel (0) target = $region17
    $region16: #{tpu_custom_call.1} parent=1 // pred_region
      _
    $region17: #{tpu_custom_call.1} parent=1 // pred_fallthru
      _
    // Predicated region
    $region18: #{tpu_custom_call.1} parent=1 // pred_check
      _
    $region19: #{tpu_custom_call.1} parent=1 // pred_check_branch
      %54 = sbr.rel (0) target = $region21
    $region20: #{tpu_custom_call.1} parent=1 // pred_region
      %s56 = ssub.s32 1024, 1024
      %57 = vsyncadd [#allocation6], %s56
      %s58 = sshll.u32 [#allocation7], 4
      %s59 = int_to_ptr.vmem [resolvable:$true] %s58
      %64 = dma.hbm_to_vmem [thread:$0]  %s4, 1024, %s59, [#allocation6], 64, 64, 4
    $region21: #{tpu_custom_call.1} parent=1 // pred_fallthru
      _
    // Predicated region
    $region22: #{tpu_custom_call.1} parent=1 // pred_check
      _
    $region23: #{tpu_custom_call.1} parent=1 // pred_check_branch
      %66 = sbr.rel (0) target = $region25
    $region24: #{tpu_custom_call.1} parent=1 // pred_region
      _
    $region25: #{tpu_custom_call.1} parent=1 // pred_fallthru
      _
    // Predicated region
    $region26: #{tpu_custom_call.1} parent=1 // pred_check
      _
    $region27: #{tpu_custom_call.1} parent=1 // pred_check_branch
      %68 = sbr.rel (0) target = $region29
    $region28: #{tpu_custom_call.1} parent=1 // pred_region
      _
    $region29: #{tpu_custom_call.1} parent=1 // pred_fallthru
      _
    // Predicated region
    $region30: #{tpu_custom_call.1} parent=1 // pred_check
      _
    $region31: #{tpu_custom_call.1} parent=1 // pred_check_branch
      %70 = sbr.rel (0) target = $region33
    $region32: #{tpu_custom_call.1} parent=1 // pred_region
      %s72 = ssub.s32 1024, 1024
      %73 = vsyncadd [#allocation9], %s72
      %s74 = sshll.u32 [#allocation8], 4
      %s75 = int_to_ptr.vmem [resolvable:$true] %s74
      %80 = dma.hbm_to_vmem [thread:$0]  %s7, 1024, %s75, [#allocation9], 64, 64, 4
    $region33: #{tpu_custom_call.1} parent=1 // pred_fallthru
      _
    // Predicated region
    $region34: #{tpu_custom_call.1} parent=1 // pred_check
      _
    $region35: #{tpu_custom_call.1} parent=1 // pred_check_branch
      %82 = sbr.rel (0) target = $region37
    $region36: #{tpu_custom_call.1} parent=1 // pred_region
      _
    $region37: #{tpu_custom_call.1} parent=1 // pred_fallthru
      _
    // Predicated region
    $region38: #{tpu_custom_call.1} parent=1 // pred_check
      _
    $region39: #{tpu_custom_call.1} parent=1 // pred_check_branch
      %84 = sbr.rel (0) target = $region41
    $region40: #{tpu_custom_call.1} parent=1 // pred_region
      _
    $region41: #{tpu_custom_call.1} parent=1 // pred_fallthru
      _
    // Predicated region
    $region42: #{tpu_custom_call.1} parent=1 // pred_check
      _
    $region43: #{tpu_custom_call.1} parent=1 // pred_check_branch
      %86 = sbr.rel (0) target = $region45
    $region44: #{tpu_custom_call.1} parent=1 // pred_region
      %s88 = ssub.s32 2048, 2048
      %89 = vsyncadd [#allocation9], %s88
      %s90 = sshll.u32 [#allocation10], 4
      %s91 = int_to_ptr.vmem [resolvable:$true] %s90
      %96 = dma.hbm_to_vmem [thread:$0]  %s10, 2048, %s91, [#allocation9], 128, 128, 8
    $region45: #{tpu_custom_call.1} parent=1 // pred_fallthru
      _
    // Predicated region
    $region46: #{tpu_custom_call.1} parent=1 // pred_check
      _
    $region47: #{tpu_custom_call.1} parent=1 // pred_check_branch
      %98 = sbr.rel (0) target = $region49
    $region48: #{tpu_custom_call.1} parent=1 // pred_region
      _
    $region49: #{tpu_custom_call.1} parent=1 // pred_fallthru
      _
    // Predicated region
    $region50: #{tpu_custom_call.1} parent=1 // pred_check
      _
    $region51: #{tpu_custom_call.1} parent=1 // pred_check_branch
      %100 = sbr.rel (0) target = $region53
    $region52: #{tpu_custom_call.1} parent=1 // pred_region
      _
    $region53: #{tpu_custom_call.1} parent=1 // pred_fallthru
      _
    // Predicated region
    $region54: #{tpu_custom_call.1} parent=1 // pred_check
      _
    $region55: #{tpu_custom_call.1} parent=1 // pred_check_branch
      %102 = sbr.rel (0) target = $region57
    $region56: #{tpu_custom_call.1} parent=1 // pred_region
      %s104 = ssub.s32 4096, 4096
      %105 = vsyncadd [#allocation12], %s104
      %s106 = sshll.u32 [#allocation11], 4
      %s107 = int_to_ptr.vmem [resolvable:$true] %s106
      %112 = dma.hbm_to_vmem [thread:$0]  %s13, 4096, %s107, [#allocation12], 128, 128, 8
    $region57: #{tpu_custom_call.1} parent=1 // pred_fallthru
      _
    // Predicated region
    $region58: #{tpu_custom_call.1} parent=1 // pred_check
      _
    $region59: #{tpu_custom_call.1} parent=1 // pred_check_branch
      %114 = sbr.rel (0) target = $region61
    $region60: #{tpu_custom_call.1} parent=1 // pred_region
      _
    $region61: #{tpu_custom_call.1} parent=1 // pred_fallthru
      _
    // Predicated region
    $region62: #{tpu_custom_call.1} parent=1 // pred_check
      _
    $region63: #{tpu_custom_call.1} parent=1 // pred_check_branch
      %116 = sbr.rel (0) target = $region65
    $region64: #{tpu_custom_call.1} parent=1 // pred_region
      %117 = dma.done [#allocation3], 1024
    $region65: #{tpu_custom_call.1} parent=1 // pred_fallthru
      _
    // Predicated region
    $region66: #{tpu_custom_call.1} parent=1 // pred_check
      _
    $region67: #{tpu_custom_call.1} parent=1 // pred_check_branch
      %119 = sbr.rel (0) target = $region69
    $region68: #{tpu_custom_call.1} parent=1 // pred_region
      %120 = dma.done [#allocation6], 1024
    $region69: #{tpu_custom_call.1} parent=1 // pred_fallthru
      _
    // Predicated region
    $region70: #{tpu_custom_call.1} parent=1 // pred_check
      _
    $region71: #{tpu_custom_call.1} parent=1 // pred_check_branch
      %122 = sbr.rel (0) target = $region73
    $region72: #{tpu_custom_call.1} parent=1 // pred_region
      %123 = dma.done [#allocation6], 1024
    $region73: #{tpu_custom_call.1} parent=1 // pred_fallthru
      _
    // Predicated region
    $region74: #{tpu_custom_call.1} parent=1 // pred_check
      _
    $region75: #{tpu_custom_call.1} parent=1 // pred_check_branch
      %125 = sbr.rel (0) target = $region77
    $region76: #{tpu_custom_call.1} parent=1 // pred_region
      %126 = dma.done [#allocation9], 1024
    $region77: #{tpu_custom_call.1} parent=1 // pred_fallthru
      _
    // Predicated region
    $region78: #{tpu_custom_call.1} parent=1 // pred_check
      _
    $region79: #{tpu_custom_call.1} parent=1 // pred_check_branch
      %128 = sbr.rel (0) target = $region81
    $region80: #{tpu_custom_call.1} parent=1 // pred_region
      %129 = dma.done [#allocation9], 2048
    $region81: #{tpu_custom_call.1} parent=1 // pred_fallthru
      _
    // Predicated region
    $region82: #{tpu_custom_call.1} parent=1 // pred_check
      _
    $region83: #{tpu_custom_call.1} parent=1 // pred_check_branch
      %131 = sbr.rel (0) target = $region85
    $region84: #{tpu_custom_call.1} parent=1 // pred_region
      %132 = dma.done [#allocation12], 4096
    $region85: #{tpu_custom_call.1} parent=1 // pred_fallthru
      _
    %v134 = vld [vmem:[#allocation2] sm:$0xf]
    %v135 = vld [vmem:[#allocation2 + $0x4] sm:$0xf]
    %v136 = vld [vmem:[#allocation2 + $0x8] sm:$0xf]
    %v137 = vld [vmem:[#allocation2 + $0xc] sm:$0xf]
    %v138 = vld [vmem:[#allocation2 + $0x10] sm:$0xf]
    %v139 = vld [vmem:[#allocation2 + $0x14] sm:$0xf]
    %v140 = vld [vmem:[#allocation2 + $0x18] sm:$0xf]
    %v141 = vld [vmem:[#allocation2 + $0x1c] sm:$0xf]
    %v142 = vld [vmem:[#allocation2 + $0x20] sm:$0xf]
    %v143 = vld [vmem:[#allocation2 + $0x24] sm:$0xf]
    %v144 = vld [vmem:[#allocation2 + $0x28] sm:$0xf]
    %v145 = vld [vmem:[#allocation2 + $0x2c] sm:$0xf]
    %v146 = vld [vmem:[#allocation2 + $0x30] sm:$0xf]
    %v147 = vld [vmem:[#allocation2 + $0x34] sm:$0xf]
    %v148 = vld [vmem:[#allocation2 + $0x38] sm:$0xf]
    %v149 = vld [vmem:[#allocation2 + $0x3c] sm:$0xf]
    %v150 = vld [vmem:[#allocation5] sm:$0xf]
    %v151 = vld [vmem:[#allocation5 + $0x4] sm:$0xf]
    %v152 = vld [vmem:[#allocation5 + $0x8] sm:$0xf]
    %v153 = vld [vmem:[#allocation5 + $0xc] sm:$0xf]
    %v154 = vld [vmem:[#allocation5 + $0x10] sm:$0xf]
    %v155 = vld [vmem:[#allocation5 + $0x14] sm:$0xf]
    %v156 = vld [vmem:[#allocation5 + $0x18] sm:$0xf]
    %v157 = vld [vmem:[#allocation5 + $0x1c] sm:$0xf]
    %v158 = vld [vmem:[#allocation5 + $0x20] sm:$0xf]
    %v159 = vld [vmem:[#allocation5 + $0x24] sm:$0xf]
    %v160 = vld [vmem:[#allocation5 + $0x28] sm:$0xf]
    %v161 = vld [vmem:[#allocation5 + $0x2c] sm:$0xf]
    %v162 = vld [vmem:[#allocation5 + $0x30] sm:$0xf]
    %v163 = vld [vmem:[#allocation5 + $0x34] sm:$0xf]
    %v164 = vld [vmem:[#allocation5 + $0x38] sm:$0xf]
    %v165 = vld [vmem:[#allocation5 + $0x3c] sm:$0xf]
    %v182 = vunpack.c.l.b16 %v134
    %v183 = vunpack.c.l.b16 %v135
    %v184 = vunpack.c.l.b16 %v136
    %v185 = vunpack.c.l.b16 %v137
    %v186 = vunpack.c.l.b16 %v138
    %v187 = vunpack.c.l.b16 %v139
    %v188 = vunpack.c.l.b16 %v140
    %v189 = vunpack.c.l.b16 %v141
    %v190 = vunpack.c.l.b16 %v142
    %v191 = vunpack.c.l.b16 %v143
    %v192 = vunpack.c.l.b16 %v144
    %v193 = vunpack.c.l.b16 %v145
    %v194 = vunpack.c.l.b16 %v146
    %v195 = vunpack.c.l.b16 %v147
    %v196 = vunpack.c.l.b16 %v148
    %v197 = vunpack.c.l.b16 %v149
    %v198 = vpack.c.b16 %v183, %v182
    %v199 = vpack.c.b16 %v185, %v184
    %v200 = vpack.c.b16 %v187, %v186
    %v201 = vpack.c.b16 %v189, %v188
    %v202 = vpack.c.b16 %v191, %v190
    %v203 = vpack.c.b16 %v193, %v192
    %v204 = vpack.c.b16 %v195, %v194
    %v205 = vpack.c.b16 %v197, %v196
    %v230 = vunpack.c.l.b16 %v150
    %v231 = vunpack.c.l.b16 %v151
    %v232 = vunpack.c.l.b16 %v152
    %v233 = vunpack.c.l.b16 %v153
    %v234 = vunpack.c.l.b16 %v154
    %v235 = vunpack.c.l.b16 %v155
    %v236 = vunpack.c.l.b16 %v156
    %v237 = vunpack.c.l.b16 %v157
    %v238 = vunpack.c.l.b16 %v158
    %v239 = vunpack.c.l.b16 %v159
    %v240 = vunpack.c.l.b16 %v160
    %v241 = vunpack.c.l.b16 %v161
    %v242 = vunpack.c.l.b16 %v162
    %v243 = vunpack.c.l.b16 %v163
    %v244 = vunpack.c.l.b16 %v164
    %v245 = vunpack.c.l.b16 %v165
    %v246 = vpack.c.b16 %v231, %v230
    %v247 = vpack.c.b16 %v233, %v232
    %v248 = vpack.c.b16 %v235, %v234
    %v249 = vpack.c.b16 %v237, %v236
    %v250 = vpack.c.b16 %v239, %v238
    %v251 = vpack.c.b16 %v241, %v240
    %v252 = vpack.c.b16 %v243, %v242
    %v253 = vpack.c.b16 %v245, %v244
    %262 = vmatprep.subr.bf16.mxu0 0
    %263 = vmatpush1.bf16.msra.mxu0 %v246
    %264 = vmatprep.subr.bf16.mxu0 0
    %265 = vmatpush1.bf16.msra.mxu0 %v247
    %266 = vmatprep.subr.bf16.mxu0 0
    %267 = vmatpush1.bf16.msra.mxu0 %v248
    %268 = vmatprep.subr.bf16.mxu0 0
    %269 = vmatpush1.bf16.msra.mxu0 %v249
    %270 = vmatprep.subr.bf16.mxu0 0
    %271 = vmatpush1.bf16.msra.mxu0 %v250
    %272 = vmatprep.subr.bf16.mxu0 0
    %273 = vmatpush1.bf16.msra.mxu0 %v251
    %274 = vmatprep.subr.bf16.mxu0 0
    %275 = vmatpush1.bf16.msra.mxu0 %v252
    %276 = vmatprep.subr.bf16.mxu0 0
    %277 = vmatpush1.bf16.msra.mxu0 %v253
    %278 = vmatprep.subr.bf16.mxu0 0
    %279 = vmatpush1.bf16.msra.mxu0 0
    %280 = vmatprep.subr.bf16.mxu0 0
    %281 = vmatpush1.bf16.msra.mxu0 0
    %282 = vmatprep.subr.bf16.mxu0 0
    %283 = vmatpush1.bf16.msra.mxu0 0
    %284 = vmatprep.subr.bf16.mxu0 0
    %285 = vmatpush1.bf16.msra.mxu0 0
    %286 = vmatprep.subr.bf16.mxu0 0
    %287 = vmatpush1.bf16.msra.mxu0 0
    %288 = vmatprep.subr.bf16.mxu0 0
    %289 = vmatpush1.bf16.msra.mxu0 0
    %290 = vmatprep.subr.bf16.mxu0 0
    %291 = vmatpush1.bf16.msra.mxu0 0
    %292 = vmatprep.subr.bf16.mxu0 0
    %293 = vmatpush1.bf16.msra.mxu0 0
    %294 = vmatprep.mubr.bf16.mxu0 0
    %295 = vmatmul.mubr.bf16.gmra.mrb[0].mxu0 %v198
    %v296 = vpop.f32.mrb[0].mxu0
    %v297 = vadd.f32 0.0, %v296
    %v298 = vpop.f32.mrb[0].mxu0
    %v299 = vpop.f32.mrb[0].mxu0
    %v300 = vadd.f32 0.0, %v299
    %v301 = vpop.f32.mrb[0].mxu0
    %302 = vmatprep.mubr.bf16.mxu0 0
    %303 = vmatmul.mubr.bf16.gmra.mrb[0].mxu0 %v199
    %v304 = vpop.f32.mrb[0].mxu0
    %v305 = vadd.f32 0.0, %v304
    %v306 = vpop.f32.mrb[0].mxu0
    %v307 = vpop.f32.mrb[0].mxu0
    %v308 = vadd.f32 0.0, %v307
    %v309 = vpop.f32.mrb[0].mxu0
    %310 = vmatprep.mubr.bf16.mxu0 0
    %311 = vmatmul.mubr.bf16.gmra.mrb[0].mxu0 %v200
    %v312 = vpop.f32.mrb[0].mxu0
    %v313 = vadd.f32 0.0, %v312
    %v314 = vpop.f32.mrb[0].mxu0
    %v315 = vpop.f32.mrb[0].mxu0
    %v316 = vadd.f32 0.0, %v315
    %v317 = vpop.f32.mrb[0].mxu0
    %318 = vmatprep.mubr.bf16.mxu0 0
    %319 = vmatmul.mubr.bf16.gmra.mrb[0].mxu0 %v201
    %v320 = vpop.f32.mrb[0].mxu0
    %v321 = vadd.f32 0.0, %v320
    %v322 = vpop.f32.mrb[0].mxu0
    %v323 = vpop.f32.mrb[0].mxu0
    %v324 = vadd.f32 0.0, %v323
    %v325 = vpop.f32.mrb[0].mxu0
    %326 = vmatprep.mubr.bf16.mxu0 0
    %327 = vmatmul.mubr.bf16.gmra.mrb[0].mxu0 %v202
    %v328 = vpop.f32.mrb[0].mxu0
    %v329 = vadd.f32 0.0, %v328
    %v330 = vpop.f32.mrb[0].mxu0
    %v331 = vpop.f32.mrb[0].mxu0
    %v332 = vadd.f32 0.0, %v331
    %v333 = vpop.f32.mrb[0].mxu0
    %334 = vmatprep.mubr.bf16.mxu0 0
    %335 = vmatmul.mubr.bf16.gmra.mrb[0].mxu0 %v203
    %v336 = vpop.f32.mrb[0].mxu0
    %v337 = vadd.f32 0.0, %v336
    %v338 = vpop.f32.mrb[0].mxu0
    %v339 = vpop.f32.mrb[0].mxu0
    %v340 = vadd.f32 0.0, %v339
    %v341 = vpop.f32.mrb[0].mxu0
    %342 = vmatprep.mubr.bf16.mxu0 0
    %343 = vmatmul.mubr.bf16.gmra.mrb[0].mxu0 %v204
    %v344 = vpop.f32.mrb[0].mxu0
    %v345 = vadd.f32 0.0, %v344
    %v346 = vpop.f32.mrb[0].mxu0
    %v347 = vpop.f32.mrb[0].mxu0
    %v348 = vadd.f32 0.0, %v347
    %v349 = vpop.f32.mrb[0].mxu0
    %350 = vmatprep.mubr.bf16.mxu0 0
    %351 = vmatmul.mubr.bf16.gmra.mrb[0].mxu0 %v205
    %v352 = vpop.f32.mrb[0].mxu0
    %v353 = vadd.f32 0.0, %v352
    %v354 = vpop.f32.mrb[0].mxu0
    %v355 = vpop.f32.mrb[0].mxu0
    %v356 = vadd.f32 0.0, %v355
    %v357 = vpop.f32.mrb[0].mxu0
    %358 = vdwg.mxu0
    %v359 = vadd.f32 %v297, %v300
    %v360 = vadd.f32 %v359, %v305
    %v361 = vadd.f32 %v360, %v308
    %v362 = vadd.f32 %v361, %v313
    %v363 = vadd.f32 %v362, %v316
    %v364 = vadd.f32 %v363, %v321
    %v365 = vadd.f32 %v364, %v324
    %v366 = vadd.f32 %v365, %v329
    %v367 = vadd.f32 %v366, %v332
    %v368 = vadd.f32 %v367, %v337
    %v369 = vadd.f32 %v368, %v340
    %v370 = vadd.f32 %v369, %v345
    %v371 = vadd.f32 %v370, %v348
    %v372 = vadd.f32 %v371, %v353
    %v373 = vadd.f32 %v372, %v356
    %v374 = vrot.slane %v373, 4
    %v375 = vadd.f32 %v373, %v374
    %v376 = vrot.slane %v375, 2
    %v377 = vadd.f32 %v375, %v376
    %v378 = vrot.slane %v377, 1
    %v379 = vadd.f32 %v377, %v378
    %v380 = vrcp.pop 128.0
    %v381 = vmul.f32 %v379, %v380
    %v382 = vmul.f32 %v297, %v297
    %v383 = vmul.f32 %v300, %v300
    %v384 = vmul.f32 %v305, %v305
    %v385 = vmul.f32 %v308, %v308
    %v386 = vmul.f32 %v313, %v313
    %v387 = vmul.f32 %v316, %v316
    %v388 = vmul.f32 %v321, %v321
    %v389 = vmul.f32 %v324, %v324
    %v390 = vmul.f32 %v329, %v329
    %v391 = vmul.f32 %v332, %v332
    %v392 = vmul.f32 %v337, %v337
    %v393 = vmul.f32 %v340, %v340
    %v394 = vmul.f32 %v345, %v345
    %v395 = vmul.f32 %v348, %v348
    %v396 = vmul.f32 %v353, %v353
    %v397 = vmul.f32 %v356, %v356
    %v398 = vadd.f32 %v382, %v383
    %v399 = vadd.f32 %v398, %v384
    %v400 = vadd.f32 %v399, %v385
    %v401 = vadd.f32 %v400, %v386
    %v402 = vadd.f32 %v401, %v387
    %v403 = vadd.f32 %v402, %v388
    %v404 = vadd.f32 %v403, %v389
    %v405 = vadd.f32 %v404, %v390
    %v406 = vadd.f32 %v405, %v391
    %v407 = vadd.f32 %v406, %v392
    %v408 = vadd.f32 %v407, %v393
    %v409 = vadd.f32 %v408, %v394
    %v410 = vadd.f32 %v409, %v395
    %v411 = vadd.f32 %v410, %v396
    %v412 = vadd.f32 %v411, %v397
    %v413 = vrot.slane %v412, 4
    %v414 = vadd.f32 %v412, %v413
    %v415 = vrot.slane %v414, 2
    %v416 = vadd.f32 %v414, %v415
    %v417 = vrot.slane %v416, 1
    %v418 = vadd.f32 %v416, %v417
    %v419 = vmul.f32 %v418, %v380
    %v420 = vmul.f32 %v381, %v381
    %v421 = vsub.f32 %v419, %v420
    %v422 = vmax.f32 %v421, 0.0
    %v423 = vld [vmem:[%s2] sm:$0x1]
    %v424 = vadd.f32 %v422, 1e-05
    %v425 = vrsqrt.pop %v424
    %v426 = vmul.f32 %v423, %v425
    %v427 = vld [vmem:[%s3] sm:$0x1]
    %v428 = vmul.f32 %v381, %v426
    %v429 = vsub.f32 %v427, %v428
    %v431 = vlaneseq
    %v432 = vshrl.u32 %v431, 7
    %v433 = vsub.s32 0, %v432
    %v434 = vrot.slane %v426, %v433
    %v436 = vmul.f32 %v297, %v434
    %v437 = vmul.f32 %v300, %v434
    %v438 = vmul.f32 %v305, %v434
    %v439 = vmul.f32 %v308, %v434
    %v440 = vmul.f32 %v313, %v434
    %v441 = vmul.f32 %v316, %v434
    %v442 = vmul.f32 %v321, %v434
    %v443 = vmul.f32 %v324, %v434
    %v444 = vmul.f32 %v329, %v434
    %v445 = vmul.f32 %v332, %v434
    %v446 = vmul.f32 %v337, %v434
    %v447 = vmul.f32 %v340, %v434
    %v448 = vmul.f32 %v345, %v434
    %v449 = vmul.f32 %v348, %v434
    %v450 = vmul.f32 %v353, %v434
    %v451 = vmul.f32 %v356, %v434
    %v453 = vlaneseq
    %v454 = vshrl.u32 %v453, 7
    %v455 = vsub.s32 0, %v454
    %v456 = vrot.slane %v429, %v455
    %v458 = vadd.f32 %v436, %v456
    %v459 = vadd.f32 %v437, %v456
    %v460 = vadd.f32 %v438, %v456
    %v461 = vadd.f32 %v439, %v456
    %v462 = vadd.f32 %v440, %v456
    %v463 = vadd.f32 %v441, %v456
    %v464 = vadd.f32 %v442, %v456
    %v465 = vadd.f32 %v443, %v456
    %v466 = vadd.f32 %v444, %v456
    %v467 = vadd.f32 %v445, %v456
    %v468 = vadd.f32 %v446, %v456
    %v469 = vadd.f32 %v447, %v456
    %v470 = vadd.f32 %v448, %v456
    %v471 = vadd.f32 %v449, %v456
    %v472 = vadd.f32 %v450, %v456
    %v473 = vadd.f32 %v451, %v456
    %v474 = vmax.f32 %v458, 0.0
    %v475 = vmax.f32 %v459, 0.0
    %v476 = vmax.f32 %v460, 0.0
    %v477 = vmax.f32 %v461, 0.0
    %v478 = vmax.f32 %v462, 0.0
    %v479 = vmax.f32 %v463, 0.0
    %v480 = vmax.f32 %v464, 0.0
    %v481 = vmax.f32 %v465, 0.0
    %v482 = vmax.f32 %v466, 0.0
    %v483 = vmax.f32 %v467, 0.0
    %v484 = vmax.f32 %v468, 0.0
    %v485 = vmax.f32 %v469, 0.0
    %v486 = vmax.f32 %v470, 0.0
    %v487 = vmax.f32 %v471, 0.0
    %v488 = vmax.f32 %v472, 0.0
    %v489 = vmax.f32 %v473, 0.0
    %v490 = vpack.c.bf16 %v475, %v474
    %v491 = vpack.c.bf16 %v477, %v476
    %v492 = vpack.c.bf16 %v479, %v478
    %v493 = vpack.c.bf16 %v481, %v480
    %v494 = vpack.c.bf16 %v483, %v482
    %v495 = vpack.c.bf16 %v485, %v484
    %v496 = vpack.c.bf16 %v487, %v486
    %v497 = vpack.c.bf16 %v489, %v488
    %v498 = vld [vmem:[#allocation7] sm:$0xf]
    %v499 = vld [vmem:[#allocation7 + $0x4] sm:$0xf]
    %v500 = vld [vmem:[#allocation7 + $0x8] sm:$0xf]
    %v501 = vld [vmem:[#allocation7 + $0xc] sm:$0xf]
    %v502 = vld [vmem:[#allocation7 + $0x10] sm:$0xf]
    %v503 = vld [vmem:[#allocation7 + $0x14] sm:$0xf]
    %v504 = vld [vmem:[#allocation7 + $0x18] sm:$0xf]
    %v505 = vld [vmem:[#allocation7 + $0x1c] sm:$0xf]
    %v506 = vld [vmem:[#allocation7 + $0x20] sm:$0xf]
    %v507 = vld [vmem:[#allocation7 + $0x24] sm:$0xf]
    %v508 = vld [vmem:[#allocation7 + $0x28] sm:$0xf]
    %v509 = vld [vmem:[#allocation7 + $0x2c] sm:$0xf]
    %v510 = vld [vmem:[#allocation7 + $0x30] sm:$0xf]
    %v511 = vld [vmem:[#allocation7 + $0x34] sm:$0xf]
    %v512 = vld [vmem:[#allocation7 + $0x38] sm:$0xf]
    %v513 = vld [vmem:[#allocation7 + $0x3c] sm:$0xf]
    %v530 = vunpack.c.l.b16 %v498
    %v531 = vunpack.c.l.b16 %v499
    %v532 = vunpack.c.l.b16 %v500
    %v533 = vunpack.c.l.b16 %v501
    %v534 = vunpack.c.l.b16 %v502
    %v535 = vunpack.c.l.b16 %v503
    %v536 = vunpack.c.l.b16 %v504
    %v537 = vunpack.c.l.b16 %v505
    %v538 = vunpack.c.l.b16 %v506
    %v539 = vunpack.c.l.b16 %v507
    %v540 = vunpack.c.l.b16 %v508
    %v541 = vunpack.c.l.b16 %v509
    %v542 = vunpack.c.l.b16 %v510
    %v543 = vunpack.c.l.b16 %v511
    %v544 = vunpack.c.l.b16 %v512
    %v545 = vunpack.c.l.b16 %v513
    %v546 = vpack.c.b16 %v531, %v530
    %v547 = vpack.c.b16 %v533, %v532
    %v548 = vpack.c.b16 %v535, %v534
    %v549 = vpack.c.b16 %v537, %v536
    %v550 = vpack.c.b16 %v539, %v538
    %v551 = vpack.c.b16 %v541, %v540
    %v552 = vpack.c.b16 %v543, %v542
    %v553 = vpack.c.b16 %v545, %v544
    %562 = vmatprep.subr.bf16.mxu0 0
    %563 = vmatpush1.bf16.msra.mxu0 %v546
    %564 = vmatprep.subr.bf16.mxu0 0
    %565 = vmatpush1.bf16.msra.mxu0 %v547
    %566 = vmatprep.subr.bf16.mxu0 0
    %567 = vmatpush1.bf16.msra.mxu0 %v548
    %568 = vmatprep.subr.bf16.mxu0 0
    %569 = vmatpush1.bf16.msra.mxu0 %v549
    %570 = vmatprep.subr.bf16.mxu0 0
    %571 = vmatpush1.bf16.msra.mxu0 %v550
    %572 = vmatprep.subr.bf16.mxu0 0
    %573 = vmatpush1.bf16.msra.mxu0 %v551
    %574 = vmatprep.subr.bf16.mxu0 0
    %575 = vmatpush1.bf16.msra.mxu0 %v552
    %576 = vmatprep.subr.bf16.mxu0 0
    %577 = vmatpush1.bf16.msra.mxu0 %v553
    %578 = vmatprep.subr.bf16.mxu0 0
    %579 = vmatpush1.bf16.msra.mxu0 0
    %580 = vmatprep.subr.bf16.mxu0 0
    %581 = vmatpush1.bf16.msra.mxu0 0
    %582 = vmatprep.subr.bf16.mxu0 0
    %583 = vmatpush1.bf16.msra.mxu0 0
    %584 = vmatprep.subr.bf16.mxu0 0
    %585 = vmatpush1.bf16.msra.mxu0 0
    %586 = vmatprep.subr.bf16.mxu0 0
    %587 = vmatpush1.bf16.msra.mxu0 0
    %588 = vmatprep.subr.bf16.mxu0 0
    %589 = vmatpush1.bf16.msra.mxu0 0
    %590 = vmatprep.subr.bf16.mxu0 0
    %591 = vmatpush1.bf16.msra.mxu0 0
    %592 = vmatprep.subr.bf16.mxu0 0
    %593 = vmatpush1.bf16.msra.mxu0 0
    %594 = vmatprep.mubr.bf16.mxu0 0
    %595 = vmatmul.mubr.bf16.gmra.mrb[0].mxu0 %v490
    %v596 = vpop.f32.mrb[0].mxu0
    %v597 = vadd.f32 0.0, %v596
    %v598 = vpop.f32.mrb[0].mxu0
    %v599 = vpop.f32.mrb[0].mxu0
    %v600 = vadd.f32 0.0, %v599
    %v601 = vpop.f32.mrb[0].mxu0
    %602 = vmatprep.mubr.bf16.mxu0 0
    %603 = vmatmul.mubr.bf16.gmra.mrb[0].mxu0 %v491
    %v604 = vpop.f32.mrb[0].mxu0
    %v605 = vadd.f32 0.0, %v604
    %v606 = vpop.f32.mrb[0].mxu0
    %v607 = vpop.f32.mrb[0].mxu0
    %v608 = vadd.f32 0.0, %v607
    %v609 = vpop.f32.mrb[0].mxu0
    %610 = vmatprep.mubr.bf16.mxu0 0
    %611 = vmatmul.mubr.bf16.gmra.mrb[0].mxu0 %v492
    %v612 = vpop.f32.mrb[0].mxu0
    %v613 = vadd.f32 0.0, %v612
    %v614 = vpop.f32.mrb[0].mxu0
    %v615 = vpop.f32.mrb[0].mxu0
    %v616 = vadd.f32 0.0, %v615
    %v617 = vpop.f32.mrb[0].mxu0
    %618 = vmatprep.mubr.bf16.mxu0 0
    %619 = vmatmul.mubr.bf16.gmra.mrb[0].mxu0 %v493
    %v620 = vpop.f32.mrb[0].mxu0
    %v621 = vadd.f32 0.0, %v620
    %v622 = vpop.f32.mrb[0].mxu0
    %v623 = vpop.f32.mrb[0].mxu0
    %v624 = vadd.f32 0.0, %v623
    %v625 = vpop.f32.mrb[0].mxu0
    %626 = vmatprep.mubr.bf16.mxu0 0
    %627 = vmatmul.mubr.bf16.gmra.mrb[0].mxu0 %v494
    %v628 = vpop.f32.mrb[0].mxu0
    %v629 = vadd.f32 0.0, %v628
    %v630 = vpop.f32.mrb[0].mxu0
    %v631 = vpop.f32.mrb[0].mxu0
    %v632 = vadd.f32 0.0, %v631
    %v633 = vpop.f32.mrb[0].mxu0
    %634 = vmatprep.mubr.bf16.mxu0 0
    %635 = vmatmul.mubr.bf16.gmra.mrb[0].mxu0 %v495
    %v636 = vpop.f32.mrb[0].mxu0
    %v637 = vadd.f32 0.0, %v636
    %v638 = vpop.f32.mrb[0].mxu0
    %v639 = vpop.f32.mrb[0].mxu0
    %v640 = vadd.f32 0.0, %v639
    %v641 = vpop.f32.mrb[0].mxu0
    %642 = vmatprep.mubr.bf16.mxu0 0
    %643 = vmatmul.mubr.bf16.gmra.mrb[0].mxu0 %v496
    %v644 = vpop.f32.mrb[0].mxu0
    %v645 = vadd.f32 0.0, %v644
    %v646 = vpop.f32.mrb[0].mxu0
    %v647 = vpop.f32.mrb[0].mxu0
    %v648 = vadd.f32 0.0, %v647
    %v649 = vpop.f32.mrb[0].mxu0
    %650 = vmatprep.mubr.bf16.mxu0 0
    %651 = vmatmul.mubr.bf16.gmra.mrb[0].mxu0 %v497
    %v652 = vpop.f32.mrb[0].mxu0
    %v653 = vadd.f32 0.0, %v652
    %v654 = vpop.f32.mrb[0].mxu0
    %v655 = vpop.f32.mrb[0].mxu0
    %v656 = vadd.f32 0.0, %v655
    %v657 = vpop.f32.mrb[0].mxu0
    %658 = vdwg.mxu0
    %v659 = vadd.f32 %v597, %v600
    %v660 = vadd.f32 %v659, %v605
    %v661 = vadd.f32 %v660, %v608
    %v662 = vadd.f32 %v661, %v613
    %v663 = vadd.f32 %v662, %v616
    %v664 = vadd.f32 %v663, %v621
    %v665 = vadd.f32 %v664, %v624
    %v666 = vadd.f32 %v665, %v629
    %v667 = vadd.f32 %v666, %v632
    %v668 = vadd.f32 %v667, %v637
    %v669 = vadd.f32 %v668, %v640
    %v670 = vadd.f32 %v669, %v645
    %v671 = vadd.f32 %v670, %v648
    %v672 = vadd.f32 %v671, %v653
    %v673 = vadd.f32 %v672, %v656
    %v674 = vrot.slane %v673, 4
    %v675 = vadd.f32 %v673, %v674
    %v676 = vrot.slane %v675, 2
    %v677 = vadd.f32 %v675, %v676
    %v678 = vrot.slane %v677, 1
    %v679 = vadd.f32 %v677, %v678
    %v680 = vmul.f32 %v679, %v380
    %v681 = vmul.f32 %v597, %v597
    %v682 = vmul.f32 %v600, %v600
    %v683 = vmul.f32 %v605, %v605
    %v684 = vmul.f32 %v608, %v608
    %v685 = vmul.f32 %v613, %v613
    %v686 = vmul.f32 %v616, %v616
    %v687 = vmul.f32 %v621, %v621
    %v688 = vmul.f32 %v624, %v624
    %v689 = vmul.f32 %v629, %v629
    %v690 = vmul.f32 %v632, %v632
    %v691 = vmul.f32 %v637, %v637
    %v692 = vmul.f32 %v640, %v640
    %v693 = vmul.f32 %v645, %v645
    %v694 = vmul.f32 %v648, %v648
    %v695 = vmul.f32 %v653, %v653
    %v696 = vmul.f32 %v656, %v656
    %v697 = vadd.f32 %v681, %v682
    %v698 = vadd.f32 %v697, %v683
    %v699 = vadd.f32 %v698, %v684
    %v700 = vadd.f32 %v699, %v685
    %v701 = vadd.f32 %v700, %v686
    %v702 = vadd.f32 %v701, %v687
    %v703 = vadd.f32 %v702, %v688
    %v704 = vadd.f32 %v703, %v689
    %v705 = vadd.f32 %v704, %v690
    %v706 = vadd.f32 %v705, %v691
    %v707 = vadd.f32 %v706, %v692
    %v708 = vadd.f32 %v707, %v693
    %v709 = vadd.f32 %v708, %v694
    %v710 = vadd.f32 %v709, %v695
    %v711 = vadd.f32 %v710, %v696
    %v712 = vrot.slane %v711, 4
    %v713 = vadd.f32 %v711, %v712
    %v714 = vrot.slane %v713, 2
    %v715 = vadd.f32 %v713, %v714
    %v716 = vrot.slane %v715, 1
    %v717 = vadd.f32 %v715, %v716
    %v718 = vmul.f32 %v717, %v380
    %v719 = vmul.f32 %v680, %v680
    %v720 = vsub.f32 %v718, %v719
    %v721 = vmax.f32 %v720, 0.0
    %v722 = vld [vmem:[%s5] sm:$0x1]
    %v723 = vadd.f32 %v721, 1e-05
    %v724 = vrsqrt.pop %v723
    %v725 = vmul.f32 %v722, %v724
    %v726 = vld [vmem:[%s6] sm:$0x1]
    %v727 = vmul.f32 %v680, %v725
    %v728 = vsub.f32 %v726, %v727
    %v730 = vlaneseq
    %v731 = vshrl.u32 %v730, 7
    %v732 = vsub.s32 0, %v731
    %v733 = vrot.slane %v725, %v732
    %v735 = vmul.f32 %v597, %v733
    %v736 = vmul.f32 %v600, %v733
    %v737 = vmul.f32 %v605, %v733
    %v738 = vmul.f32 %v608, %v733
    %v739 = vmul.f32 %v613, %v733
    %v740 = vmul.f32 %v616, %v733
    %v741 = vmul.f32 %v621, %v733
    %v742 = vmul.f32 %v624, %v733
    %v743 = vmul.f32 %v629, %v733
    %v744 = vmul.f32 %v632, %v733
    %v745 = vmul.f32 %v637, %v733
    %v746 = vmul.f32 %v640, %v733
    %v747 = vmul.f32 %v645, %v733
    %v748 = vmul.f32 %v648, %v733
    %v749 = vmul.f32 %v653, %v733
    %v750 = vmul.f32 %v656, %v733
    %v752 = vlaneseq
    %v753 = vshrl.u32 %v752, 7
    %v754 = vsub.s32 0, %v753
    %v755 = vrot.slane %v728, %v754
    %v757 = vadd.f32 %v735, %v755
    %v758 = vadd.f32 %v736, %v755
    %v759 = vadd.f32 %v737, %v755
    %v760 = vadd.f32 %v738, %v755
    %v761 = vadd.f32 %v739, %v755
    %v762 = vadd.f32 %v740, %v755
    %v763 = vadd.f32 %v741, %v755
    %v764 = vadd.f32 %v742, %v755
    %v765 = vadd.f32 %v743, %v755
    %v766 = vadd.f32 %v744, %v755
    %v767 = vadd.f32 %v745, %v755
    %v768 = vadd.f32 %v746, %v755
    %v769 = vadd.f32 %v747, %v755
    %v770 = vadd.f32 %v748, %v755
    %v771 = vadd.f32 %v749, %v755
    %v772 = vadd.f32 %v750, %v755
    %v773 = vmax.f32 %v757, 0.0
    %v774 = vmax.f32 %v758, 0.0
    %v775 = vmax.f32 %v759, 0.0
    %v776 = vmax.f32 %v760, 0.0
    %v777 = vmax.f32 %v761, 0.0
    %v778 = vmax.f32 %v762, 0.0
    %v779 = vmax.f32 %v763, 0.0
    %v780 = vmax.f32 %v764, 0.0
    %v781 = vmax.f32 %v765, 0.0
    %v782 = vmax.f32 %v766, 0.0
    %v783 = vmax.f32 %v767, 0.0
    %v784 = vmax.f32 %v768, 0.0
    %v785 = vmax.f32 %v769, 0.0
    %v786 = vmax.f32 %v770, 0.0
    %v787 = vmax.f32 %v771, 0.0
    %v788 = vmax.f32 %v772, 0.0
    %v789 = vpack.c.bf16 %v774, %v773
    %v790 = vpack.c.bf16 %v776, %v775
    %v791 = vpack.c.bf16 %v778, %v777
    %v792 = vpack.c.bf16 %v780, %v779
    %v793 = vpack.c.bf16 %v782, %v781
    %v794 = vpack.c.bf16 %v784, %v783
    %v795 = vpack.c.bf16 %v786, %v785
    %v796 = vpack.c.bf16 %v788, %v787
    %v797 = vld [vmem:[#allocation8] sm:$0xf]
    %v798 = vld [vmem:[#allocation8 + $0x4] sm:$0xf]
    %v799 = vld [vmem:[#allocation8 + $0x8] sm:$0xf]
    %v800 = vld [vmem:[#allocation8 + $0xc] sm:$0xf]
    %v801 = vld [vmem:[#allocation8 + $0x10] sm:$0xf]
    %v802 = vld [vmem:[#allocation8 + $0x14] sm:$0xf]
    %v803 = vld [vmem:[#allocation8 + $0x18] sm:$0xf]
    %v804 = vld [vmem:[#allocation8 + $0x1c] sm:$0xf]
    %v805 = vld [vmem:[#allocation8 + $0x20] sm:$0xf]
    %v806 = vld [vmem:[#allocation8 + $0x24] sm:$0xf]
    %v807 = vld [vmem:[#allocation8 + $0x28] sm:$0xf]
    %v808 = vld [vmem:[#allocation8 + $0x2c] sm:$0xf]
    %v809 = vld [vmem:[#allocation8 + $0x30] sm:$0xf]
    %v810 = vld [vmem:[#allocation8 + $0x34] sm:$0xf]
    %v811 = vld [vmem:[#allocation8 + $0x38] sm:$0xf]
    %v812 = vld [vmem:[#allocation8 + $0x3c] sm:$0xf]
    %v829 = vunpack.c.l.b16 %v797
    %v830 = vunpack.c.l.b16 %v798
    %v831 = vunpack.c.l.b16 %v799
    %v832 = vunpack.c.l.b16 %v800
    %v833 = vunpack.c.l.b16 %v801
    %v834 = vunpack.c.l.b16 %v802
    %v835 = vunpack.c.l.b16 %v803
    %v836 = vunpack.c.l.b16 %v804
    %v837 = vunpack.c.l.b16 %v805
    %v838 = vunpack.c.l.b16 %v806
    %v839 = vunpack.c.l.b16 %v807
    %v840 = vunpack.c.l.b16 %v808
    %v841 = vunpack.c.l.b16 %v809
    %v842 = vunpack.c.l.b16 %v810
    %v843 = vunpack.c.l.b16 %v811
    %v844 = vunpack.c.l.b16 %v812
    %v845 = vpack.c.b16 %v830, %v829
    %v846 = vpack.c.b16 %v832, %v831
    %v847 = vpack.c.b16 %v834, %v833
    %v848 = vpack.c.b16 %v836, %v835
    %v849 = vpack.c.b16 %v838, %v837
    %v850 = vpack.c.b16 %v840, %v839
    %v851 = vpack.c.b16 %v842, %v841
    %v852 = vpack.c.b16 %v844, %v843
    %861 = vmatprep.subr.bf16.mxu0 0
    %862 = vmatpush1.bf16.msra.mxu0 %v845
    %863 = vmatprep.subr.bf16.mxu0 0
    %864 = vmatpush1.bf16.msra.mxu0 %v846
    %865 = vmatprep.subr.bf16.mxu0 0
    %866 = vmatpush1.bf16.msra.mxu0 %v847
    %867 = vmatprep.subr.bf16.mxu0 0
    %868 = vmatpush1.bf16.msra.mxu0 %v848
    %869 = vmatprep.subr.bf16.mxu0 0
    %870 = vmatpush1.bf16.msra.mxu0 %v849
    %871 = vmatprep.subr.bf16.mxu0 0
    %872 = vmatpush1.bf16.msra.mxu0 %v850
    %873 = vmatprep.subr.bf16.mxu0 0
    %874 = vmatpush1.bf16.msra.mxu0 %v851
    %875 = vmatprep.subr.bf16.mxu0 0
    %876 = vmatpush1.bf16.msra.mxu0 %v852
    %877 = vmatprep.subr.bf16.mxu0 0
    %878 = vmatpush1.bf16.msra.mxu0 0
    %879 = vmatprep.subr.bf16.mxu0 0
    %880 = vmatpush1.bf16.msra.mxu0 0
    %881 = vmatprep.subr.bf16.mxu0 0
    %882 = vmatpush1.bf16.msra.mxu0 0
    %883 = vmatprep.subr.bf16.mxu0 0
    %884 = vmatpush1.bf16.msra.mxu0 0
    %885 = vmatprep.subr.bf16.mxu0 0
    %886 = vmatpush1.bf16.msra.mxu0 0
    %887 = vmatprep.subr.bf16.mxu0 0
    %888 = vmatpush1.bf16.msra.mxu0 0
    %889 = vmatprep.subr.bf16.mxu0 0
    %890 = vmatpush1.bf16.msra.mxu0 0
    %891 = vmatprep.subr.bf16.mxu0 0
    %892 = vmatpush1.bf16.msra.mxu0 0
    %893 = vmatprep.mubr.bf16.mxu0 0
    %894 = vmatmul.mubr.bf16.gmra.mrb[0].mxu0 %v789
    %v895 = vpop.f32.mrb[0].mxu0
    %v896 = vadd.f32 0.0, %v895
    %v897 = vpop.f32.mrb[0].mxu0
    %v898 = vpop.f32.mrb[0].mxu0
    %v899 = vadd.f32 0.0, %v898
    %v900 = vpop.f32.mrb[0].mxu0
    %901 = vmatprep.mubr.bf16.mxu0 0
    %902 = vmatmul.mubr.bf16.gmra.mrb[0].mxu0 %v790
    %v903 = vpop.f32.mrb[0].mxu0
    %v904 = vadd.f32 0.0, %v903
    %v905 = vpop.f32.mrb[0].mxu0
    %v906 = vpop.f32.mrb[0].mxu0
    %v907 = vadd.f32 0.0, %v906
    %v908 = vpop.f32.mrb[0].mxu0
    %909 = vmatprep.mubr.bf16.mxu0 0
    %910 = vmatmul.mubr.bf16.gmra.mrb[0].mxu0 %v791
    %v911 = vpop.f32.mrb[0].mxu0
    %v912 = vadd.f32 0.0, %v911
    %v913 = vpop.f32.mrb[0].mxu0
    %v914 = vpop.f32.mrb[0].mxu0
    %v915 = vadd.f32 0.0, %v914
    %v916 = vpop.f32.mrb[0].mxu0
    %917 = vmatprep.mubr.bf16.mxu0 0
    %918 = vmatmul.mubr.bf16.gmra.mrb[0].mxu0 %v792
    %v919 = vpop.f32.mrb[0].mxu0
    %v920 = vadd.f32 0.0, %v919
    %v921 = vpop.f32.mrb[0].mxu0
    %v922 = vpop.f32.mrb[0].mxu0
    %v923 = vadd.f32 0.0, %v922
    %v924 = vpop.f32.mrb[0].mxu0
    %925 = vmatprep.mubr.bf16.mxu0 0
    %926 = vmatmul.mubr.bf16.gmra.mrb[0].mxu0 %v793
    %v927 = vpop.f32.mrb[0].mxu0
    %v928 = vadd.f32 0.0, %v927
    %v929 = vpop.f32.mrb[0].mxu0
    %v930 = vpop.f32.mrb[0].mxu0
    %v931 = vadd.f32 0.0, %v930
    %v932 = vpop.f32.mrb[0].mxu0
    %933 = vmatprep.mubr.bf16.mxu0 0
    %934 = vmatmul.mubr.bf16.gmra.mrb[0].mxu0 %v794
    %v935 = vpop.f32.mrb[0].mxu0
    %v936 = vadd.f32 0.0, %v935
    %v937 = vpop.f32.mrb[0].mxu0
    %v938 = vpop.f32.mrb[0].mxu0
    %v939 = vadd.f32 0.0, %v938
    %v940 = vpop.f32.mrb[0].mxu0
    %941 = vmatprep.mubr.bf16.mxu0 0
    %942 = vmatmul.mubr.bf16.gmra.mrb[0].mxu0 %v795
    %v943 = vpop.f32.mrb[0].mxu0
    %v944 = vadd.f32 0.0, %v943
    %v945 = vpop.f32.mrb[0].mxu0
    %v946 = vpop.f32.mrb[0].mxu0
    %v947 = vadd.f32 0.0, %v946
    %v948 = vpop.f32.mrb[0].mxu0
    %949 = vmatprep.mubr.bf16.mxu0 0
    %950 = vmatmul.mubr.bf16.gmra.mrb[0].mxu0 %v796
    %v951 = vpop.f32.mrb[0].mxu0
    %v952 = vadd.f32 0.0, %v951
    %v953 = vpop.f32.mrb[0].mxu0
    %v954 = vpop.f32.mrb[0].mxu0
    %v955 = vadd.f32 0.0, %v954
    %v956 = vpop.f32.mrb[0].mxu0
    %957 = vdwg.mxu0
    %v958 = vadd.f32 %v896, %v899
    %v959 = vadd.f32 %v958, %v904
    %v960 = vadd.f32 %v959, %v907
    %v961 = vadd.f32 %v960, %v912
    %v962 = vadd.f32 %v961, %v915
    %v963 = vadd.f32 %v962, %v920
    %v964 = vadd.f32 %v963, %v923
    %v965 = vadd.f32 %v964, %v928
    %v966 = vadd.f32 %v965, %v931
    %v967 = vadd.f32 %v966, %v936
    %v968 = vadd.f32 %v967, %v939
    %v969 = vadd.f32 %v968, %v944
    %v970 = vadd.f32 %v969, %v947
    %v971 = vadd.f32 %v970, %v952
    %v972 = vadd.f32 %v971, %v955
    %v973 = vrot.slane %v972, 4
    %v974 = vadd.f32 %v972, %v973
    %v975 = vrot.slane %v974, 2
    %v976 = vadd.f32 %v974, %v975
    %v977 = vrot.slane %v976, 1
    %v978 = vadd.f32 %v976, %v977
    %v979 = vmul.f32 %v978, %v380
    %v980 = vmul.f32 %v896, %v896
    %v981 = vmul.f32 %v899, %v899
    %v982 = vmul.f32 %v904, %v904
    %v983 = vmul.f32 %v907, %v907
    %v984 = vmul.f32 %v912, %v912
    %v985 = vmul.f32 %v915, %v915
    %v986 = vmul.f32 %v920, %v920
    %v987 = vmul.f32 %v923, %v923
    %v988 = vmul.f32 %v928, %v928
    %v989 = vmul.f32 %v931, %v931
    %v990 = vmul.f32 %v936, %v936
    %v991 = vmul.f32 %v939, %v939
    %v992 = vmul.f32 %v944, %v944
    %v993 = vmul.f32 %v947, %v947
    %v994 = vmul.f32 %v952, %v952
    %v995 = vmul.f32 %v955, %v955
    %v996 = vadd.f32 %v980, %v981
    %v997 = vadd.f32 %v996, %v982
    %v998 = vadd.f32 %v997, %v983
    %v999 = vadd.f32 %v998, %v984
    %v1000 = vadd.f32 %v999, %v985
    %v1001 = vadd.f32 %v1000, %v986
    %v1002 = vadd.f32 %v1001, %v987
    %v1003 = vadd.f32 %v1002, %v988
    %v1004 = vadd.f32 %v1003, %v989
    %v1005 = vadd.f32 %v1004, %v990
    %v1006 = vadd.f32 %v1005, %v991
    %v1007 = vadd.f32 %v1006, %v992
    %v1008 = vadd.f32 %v1007, %v993
    %v1009 = vadd.f32 %v1008, %v994
    %v1010 = vadd.f32 %v1009, %v995
    %v1011 = vrot.slane %v1010, 4
    %v1012 = vadd.f32 %v1010, %v1011
    %v1013 = vrot.slane %v1012, 2
    %v1014 = vadd.f32 %v1012, %v1013
    %v1015 = vrot.slane %v1014, 1
    %v1016 = vadd.f32 %v1014, %v1015
    %v1017 = vmul.f32 %v1016, %v380
    %v1018 = vmul.f32 %v979, %v979
    %v1019 = vsub.f32 %v1017, %v1018
    %v1020 = vmax.f32 %v1019, 0.0
    %v1021 = vld [vmem:[%s8] sm:$0x1]
    %v1022 = vadd.f32 %v1020, 1e-05
    %v1023 = vrsqrt.pop %v1022
    %v1024 = vmul.f32 %v1021, %v1023
    %v1025 = vld [vmem:[%s9] sm:$0x1]
    %v1026 = vmul.f32 %v979, %v1024
    %v1027 = vsub.f32 %v1025, %v1026
    %v1029 = vlaneseq
    %v1030 = vshrl.u32 %v1029, 7
    %v1031 = vsub.s32 0, %v1030
    %v1032 = vrot.slane %v1024, %v1031
    %v1034 = vmul.f32 %v896, %v1032
    %v1035 = vmul.f32 %v899, %v1032
    %v1036 = vmul.f32 %v904, %v1032
    %v1037 = vmul.f32 %v907, %v1032
    %v1038 = vmul.f32 %v912, %v1032
    %v1039 = vmul.f32 %v915, %v1032
    %v1040 = vmul.f32 %v920, %v1032
    %v1041 = vmul.f32 %v923, %v1032
    %v1042 = vmul.f32 %v928, %v1032
    %v1043 = vmul.f32 %v931, %v1032
    %v1044 = vmul.f32 %v936, %v1032
    %v1045 = vmul.f32 %v939, %v1032
    %v1046 = vmul.f32 %v944, %v1032
    %v1047 = vmul.f32 %v947, %v1032
    %v1048 = vmul.f32 %v952, %v1032
    %v1049 = vmul.f32 %v955, %v1032
    %v1051 = vlaneseq
    %v1052 = vshrl.u32 %v1051, 7
    %v1053 = vsub.s32 0, %v1052
    %v1054 = vrot.slane %v1027, %v1053
    %v1056 = vadd.f32 %v1034, %v1054
    %v1057 = vadd.f32 %v1035, %v1054
    %v1058 = vadd.f32 %v1036, %v1054
    %v1059 = vadd.f32 %v1037, %v1054
    %v1060 = vadd.f32 %v1038, %v1054
    %v1061 = vadd.f32 %v1039, %v1054
    %v1062 = vadd.f32 %v1040, %v1054
    %v1063 = vadd.f32 %v1041, %v1054
    %v1064 = vadd.f32 %v1042, %v1054
    %v1065 = vadd.f32 %v1043, %v1054
    %v1066 = vadd.f32 %v1044, %v1054
    %v1067 = vadd.f32 %v1045, %v1054
    %v1068 = vadd.f32 %v1046, %v1054
    %v1069 = vadd.f32 %v1047, %v1054
    %v1070 = vadd.f32 %v1048, %v1054
    %v1071 = vadd.f32 %v1049, %v1054
    %v1072 = vmax.f32 %v1056, 0.0
    %v1073 = vmax.f32 %v1057, 0.0
    %v1074 = vmax.f32 %v1058, 0.0
    %v1075 = vmax.f32 %v1059, 0.0
    %v1076 = vmax.f32 %v1060, 0.0
    %v1077 = vmax.f32 %v1061, 0.0
    %v1078 = vmax.f32 %v1062, 0.0
    %v1079 = vmax.f32 %v1063, 0.0
    %v1080 = vmax.f32 %v1064, 0.0
    %v1081 = vmax.f32 %v1065, 0.0
    %v1082 = vmax.f32 %v1066, 0.0
    %v1083 = vmax.f32 %v1067, 0.0
    %v1084 = vmax.f32 %v1068, 0.0
    %v1085 = vmax.f32 %v1069, 0.0
    %v1086 = vmax.f32 %v1070, 0.0
    %v1087 = vmax.f32 %v1071, 0.0
    %v1088 = vpack.c.bf16 %v1073, %v1072
    %v1089 = vpack.c.bf16 %v1075, %v1074
    %v1090 = vpack.c.bf16 %v1077, %v1076
    %v1091 = vpack.c.bf16 %v1079, %v1078
    %v1092 = vpack.c.bf16 %v1081, %v1080
    %v1093 = vpack.c.bf16 %v1083, %v1082
    %v1094 = vpack.c.bf16 %v1085, %v1084
    %v1095 = vpack.c.bf16 %v1087, %v1086
    %v1096 = vld [vmem:[#allocation10] sm:$0xff]
    %v1097 = vld [vmem:[#allocation10 + $0x8] sm:$0xff]
    %v1098 = vld [vmem:[#allocation10 + $0x10] sm:$0xff]
    %v1099 = vld [vmem:[#allocation10 + $0x18] sm:$0xff]
    %v1100 = vld [vmem:[#allocation10 + $0x20] sm:$0xff]
    %v1101 = vld [vmem:[#allocation10 + $0x28] sm:$0xff]
    %v1102 = vld [vmem:[#allocation10 + $0x30] sm:$0xff]
    %v1103 = vld [vmem:[#allocation10 + $0x38] sm:$0xff]
    %v1104 = vld [vmem:[#allocation10 + $0x40] sm:$0xff]
    %v1105 = vld [vmem:[#allocation10 + $0x48] sm:$0xff]
    %v1106 = vld [vmem:[#allocation10 + $0x50] sm:$0xff]
    %v1107 = vld [vmem:[#allocation10 + $0x58] sm:$0xff]
    %v1108 = vld [vmem:[#allocation10 + $0x60] sm:$0xff]
    %v1109 = vld [vmem:[#allocation10 + $0x68] sm:$0xff]
    %v1110 = vld [vmem:[#allocation10 + $0x70] sm:$0xff]
    %v1111 = vld [vmem:[#allocation10 + $0x78] sm:$0xff]
    %v1128 = vunpack.c.l.b16 %v1096
    %v1129 = vunpack.c.h.b16 %v1096
    %v1130 = vunpack.c.l.b16 %v1097
    %v1131 = vunpack.c.h.b16 %v1097
    %v1132 = vunpack.c.l.b16 %v1098
    %v1133 = vunpack.c.h.b16 %v1098
    %v1134 = vunpack.c.l.b16 %v1099
    %v1135 = vunpack.c.h.b16 %v1099
    %v1136 = vunpack.c.l.b16 %v1100
    %v1137 = vunpack.c.h.b16 %v1100
    %v1138 = vunpack.c.l.b16 %v1101
    %v1139 = vunpack.c.h.b16 %v1101
    %v1140 = vunpack.c.l.b16 %v1102
    %v1141 = vunpack.c.h.b16 %v1102
    %v1142 = vunpack.c.l.b16 %v1103
    %v1143 = vunpack.c.h.b16 %v1103
    %v1144 = vunpack.c.l.b16 %v1104
    %v1145 = vunpack.c.h.b16 %v1104
    %v1146 = vunpack.c.l.b16 %v1105
    %v1147 = vunpack.c.h.b16 %v1105
    %v1148 = vunpack.c.l.b16 %v1106
    %v1149 = vunpack.c.h.b16 %v1106
    %v1150 = vunpack.c.l.b16 %v1107
    %v1151 = vunpack.c.h.b16 %v1107
    %v1152 = vunpack.c.l.b16 %v1108
    %v1153 = vunpack.c.h.b16 %v1108
    %v1154 = vunpack.c.l.b16 %v1109
    %v1155 = vunpack.c.h.b16 %v1109
    %v1156 = vunpack.c.l.b16 %v1110
    %v1157 = vunpack.c.h.b16 %v1110
    %v1158 = vunpack.c.l.b16 %v1111
    %v1159 = vunpack.c.h.b16 %v1111
    %v1160 = vpack.c.b16 %v1130, %v1128
    %v1161 = vpack.c.b16 %v1131, %v1129
    %v1162 = vpack.c.b16 %v1134, %v1132
    %v1163 = vpack.c.b16 %v1135, %v1133
    %v1164 = vpack.c.b16 %v1138, %v1136
    %v1165 = vpack.c.b16 %v1139, %v1137
    %v1166 = vpack.c.b16 %v1142, %v1140
    %v1167 = vpack.c.b16 %v1143, %v1141
    %v1168 = vpack.c.b16 %v1146, %v1144
    %v1169 = vpack.c.b16 %v1147, %v1145
    %v1170 = vpack.c.b16 %v1150, %v1148
    %v1171 = vpack.c.b16 %v1151, %v1149
    %v1172 = vpack.c.b16 %v1154, %v1152
    %v1173 = vpack.c.b16 %v1155, %v1153
    %v1174 = vpack.c.b16 %v1158, %v1156
    %v1175 = vpack.c.b16 %v1159, %v1157
    %1192 = vmatprep.subr.bf16.mxu0 %v1161
    %1193 = vmatpush1.bf16.msra.mxu0 %v1160
    %1194 = vmatprep.subr.bf16.mxu0 %v1163
    %1195 = vmatpush1.bf16.msra.mxu0 %v1162
    %1196 = vmatprep.subr.bf16.mxu0 %v1165
    %1197 = vmatpush1.bf16.msra.mxu0 %v1164
    %1198 = vmatprep.subr.bf16.mxu0 %v1167
    %1199 = vmatpush1.bf16.msra.mxu0 %v1166
    %1200 = vmatprep.subr.bf16.mxu0 %v1169
    %1201 = vmatpush1.bf16.msra.mxu0 %v1168
    %1202 = vmatprep.subr.bf16.mxu0 %v1171
    %1203 = vmatpush1.bf16.msra.mxu0 %v1170
    %1204 = vmatprep.subr.bf16.mxu0 %v1173
    %1205 = vmatpush1.bf16.msra.mxu0 %v1172
    %1206 = vmatprep.subr.bf16.mxu0 %v1175
    %1207 = vmatpush1.bf16.msra.mxu0 %v1174
    %1208 = vmatprep.subr.bf16.mxu0 0
    %1209 = vmatpush1.bf16.msra.mxu0 0
    %1210 = vmatprep.subr.bf16.mxu0 0
    %1211 = vmatpush1.bf16.msra.mxu0 0
    %1212 = vmatprep.subr.bf16.mxu0 0
    %1213 = vmatpush1.bf16.msra.mxu0 0
    %1214 = vmatprep.subr.bf16.mxu0 0
    %1215 = vmatpush1.bf16.msra.mxu0 0
    %1216 = vmatprep.subr.bf16.mxu0 0
    %1217 = vmatpush1.bf16.msra.mxu0 0
    %1218 = vmatprep.subr.bf16.mxu0 0
    %1219 = vmatpush1.bf16.msra.mxu0 0
    %1220 = vmatprep.subr.bf16.mxu0 0
    %1221 = vmatpush1.bf16.msra.mxu0 0
    %1222 = vmatprep.subr.bf16.mxu0 0
    %1223 = vmatpush1.bf16.msra.mxu0 0
    %1224 = vmatprep.mubr.bf16.mxu0 0
    %1225 = vmatmul.mubr.bf16.gmra.mrb[0].mxu0 %v1088
    %v1226 = vpop.f32.mrb[0].mxu0
    %v1227 = vadd.f32 0.0, %v1226
    %v1228 = vpop.f32.mrb[0].mxu0
    %v1229 = vadd.f32 0.0, %v1228
    %v1230 = vpop.f32.mrb[0].mxu0
    %v1231 = vadd.f32 0.0, %v1230
    %v1232 = vpop.f32.mrb[0].mxu0
    %v1233 = vadd.f32 0.0, %v1232
    %1234 = vmatprep.mubr.bf16.mxu0 0
    %1235 = vmatmul.mubr.bf16.gmra.mrb[0].mxu0 %v1089
    %v1236 = vpop.f32.mrb[0].mxu0
    %v1237 = vadd.f32 0.0, %v1236
    %v1238 = vpop.f32.mrb[0].mxu0
    %v1239 = vadd.f32 0.0, %v1238
    %v1240 = vpop.f32.mrb[0].mxu0
    %v1241 = vadd.f32 0.0, %v1240
    %v1242 = vpop.f32.mrb[0].mxu0
    %v1243 = vadd.f32 0.0, %v1242
    %1244 = vmatprep.mubr.bf16.mxu0 0
    %1245 = vmatmul.mubr.bf16.gmra.mrb[0].mxu0 %v1090
    %v1246 = vpop.f32.mrb[0].mxu0
    %v1247 = vadd.f32 0.0, %v1246
    %v1248 = vpop.f32.mrb[0].mxu0
    %v1249 = vadd.f32 0.0, %v1248
    %v1250 = vpop.f32.mrb[0].mxu0
    %v1251 = vadd.f32 0.0, %v1250
    %v1252 = vpop.f32.mrb[0].mxu0
    %v1253 = vadd.f32 0.0, %v1252
    %1254 = vmatprep.mubr.bf16.mxu0 0
    %1255 = vmatmul.mubr.bf16.gmra.mrb[0].mxu0 %v1091
    %v1256 = vpop.f32.mrb[0].mxu0
    %v1257 = vadd.f32 0.0, %v1256
    %v1258 = vpop.f32.mrb[0].mxu0
    %v1259 = vadd.f32 0.0, %v1258
    %v1260 = vpop.f32.mrb[0].mxu0
    %v1261 = vadd.f32 0.0, %v1260
    %v1262 = vpop.f32.mrb[0].mxu0
    %v1263 = vadd.f32 0.0, %v1262
    %1264 = vmatprep.mubr.bf16.mxu0 0
    %1265 = vmatmul.mubr.bf16.gmra.mrb[0].mxu0 %v1092
    %v1266 = vpop.f32.mrb[0].mxu0
    %v1267 = vadd.f32 0.0, %v1266
    %v1268 = vpop.f32.mrb[0].mxu0
    %v1269 = vadd.f32 0.0, %v1268
    %v1270 = vpop.f32.mrb[0].mxu0
    %v1271 = vadd.f32 0.0, %v1270
    %v1272 = vpop.f32.mrb[0].mxu0
    %v1273 = vadd.f32 0.0, %v1272
    %1274 = vmatprep.mubr.bf16.mxu0 0
    %1275 = vmatmul.mubr.bf16.gmra.mrb[0].mxu0 %v1093
    %v1276 = vpop.f32.mrb[0].mxu0
    %v1277 = vadd.f32 0.0, %v1276
    %v1278 = vpop.f32.mrb[0].mxu0
    %v1279 = vadd.f32 0.0, %v1278
    %v1280 = vpop.f32.mrb[0].mxu0
    %v1281 = vadd.f32 0.0, %v1280
    %v1282 = vpop.f32.mrb[0].mxu0
    %v1283 = vadd.f32 0.0, %v1282
    %1284 = vmatprep.mubr.bf16.mxu0 0
    %1285 = vmatmul.mubr.bf16.gmra.mrb[0].mxu0 %v1094
    %v1286 = vpop.f32.mrb[0].mxu0
    %v1287 = vadd.f32 0.0, %v1286
    %v1288 = vpop.f32.mrb[0].mxu0
    %v1289 = vadd.f32 0.0, %v1288
    %v1290 = vpop.f32.mrb[0].mxu0
    %v1291 = vadd.f32 0.0, %v1290
    %v1292 = vpop.f32.mrb[0].mxu0
    %v1293 = vadd.f32 0.0, %v1292
    %1294 = vmatprep.mubr.bf16.mxu0 0
    %1295 = vmatmul.mubr.bf16.gmra.mrb[0].mxu0 %v1095
    %v1296 = vpop.f32.mrb[0].mxu0
    %v1297 = vadd.f32 0.0, %v1296
    %v1298 = vpop.f32.mrb[0].mxu0
    %v1299 = vadd.f32 0.0, %v1298
    %v1300 = vpop.f32.mrb[0].mxu0
    %v1301 = vadd.f32 0.0, %v1300
    %v1302 = vpop.f32.mrb[0].mxu0
    %v1303 = vadd.f32 0.0, %v1302
    %1304 = vdwg.mxu0
    %v1305 = vadd.f32 %v1227, %v1231
    %v1306 = vadd.f32 %v1305, %v1237
    %v1307 = vadd.f32 %v1306, %v1241
    %v1308 = vadd.f32 %v1307, %v1247
    %v1309 = vadd.f32 %v1308, %v1251
    %v1310 = vadd.f32 %v1309, %v1257
    %v1311 = vadd.f32 %v1310, %v1261
    %v1312 = vadd.f32 %v1311, %v1267
    %v1313 = vadd.f32 %v1312, %v1271
    %v1314 = vadd.f32 %v1313, %v1277
    %v1315 = vadd.f32 %v1314, %v1281
    %v1316 = vadd.f32 %v1315, %v1287
    %v1317 = vadd.f32 %v1316, %v1291
    %v1318 = vadd.f32 %v1317, %v1297
    %v1319 = vadd.f32 %v1318, %v1301
    %v1320 = vrot.slane %v1319, 4
    %v1321 = vadd.f32 %v1319, %v1320
    %v1322 = vrot.slane %v1321, 2
    %v1323 = vadd.f32 %v1321, %v1322
    %v1324 = vrot.slane %v1323, 1
    %v1325 = vadd.f32 %v1323, %v1324
    %v1326 = vadd.f32 %v1229, %v1233
    %v1327 = vadd.f32 %v1326, %v1239
    %v1328 = vadd.f32 %v1327, %v1243
    %v1329 = vadd.f32 %v1328, %v1249
    %v1330 = vadd.f32 %v1329, %v1253
    %v1331 = vadd.f32 %v1330, %v1259
    %v1332 = vadd.f32 %v1331, %v1263
    %v1333 = vadd.f32 %v1332, %v1269
    %v1334 = vadd.f32 %v1333, %v1273
    %v1335 = vadd.f32 %v1334, %v1279
    %v1336 = vadd.f32 %v1335, %v1283
    %v1337 = vadd.f32 %v1336, %v1289
    %v1338 = vadd.f32 %v1337, %v1293
    %v1339 = vadd.f32 %v1338, %v1299
    %v1340 = vadd.f32 %v1339, %v1303
    %v1341 = vrot.slane %v1340, 4
    %v1342 = vadd.f32 %v1340, %v1341
    %v1343 = vrot.slane %v1342, 2
    %v1344 = vadd.f32 %v1342, %v1343
    %v1345 = vrot.slane %v1344, 1
    %v1346 = vadd.f32 %v1344, %v1345
    %v1347 = vmul.f32 %v1325, %v380
    %v1348 = vmul.f32 %v1346, %v380
    %v1349 = vmul.f32 %v1227, %v1227
    %v1350 = vmul.f32 %v1229, %v1229
    %v1351 = vmul.f32 %v1231, %v1231
    %v1352 = vmul.f32 %v1233, %v1233
    %v1353 = vmul.f32 %v1237, %v1237
    %v1354 = vmul.f32 %v1239, %v1239
    %v1355 = vmul.f32 %v1241, %v1241
    %v1356 = vmul.f32 %v1243, %v1243
    %v1357 = vmul.f32 %v1247, %v1247
    %v1358 = vmul.f32 %v1249, %v1249
    %v1359 = vmul.f32 %v1251, %v1251
    %v1360 = vmul.f32 %v1253, %v1253
    %v1361 = vmul.f32 %v1257, %v1257
    %v1362 = vmul.f32 %v1259, %v1259
    %v1363 = vmul.f32 %v1261, %v1261
    %v1364 = vmul.f32 %v1263, %v1263
    %v1365 = vmul.f32 %v1267, %v1267
    %v1366 = vmul.f32 %v1269, %v1269
    %v1367 = vmul.f32 %v1271, %v1271
    %v1368 = vmul.f32 %v1273, %v1273
    %v1369 = vmul.f32 %v1277, %v1277
    %v1370 = vmul.f32 %v1279, %v1279
    %v1371 = vmul.f32 %v1281, %v1281
    %v1372 = vmul.f32 %v1283, %v1283
    %v1373 = vmul.f32 %v1287, %v1287
    %v1374 = vmul.f32 %v1289, %v1289
    %v1375 = vmul.f32 %v1291, %v1291
    %v1376 = vmul.f32 %v1293, %v1293
    %v1377 = vmul.f32 %v1297, %v1297
    %v1378 = vmul.f32 %v1299, %v1299
    %v1379 = vmul.f32 %v1301, %v1301
    %v1380 = vmul.f32 %v1303, %v1303
    %v1381 = vadd.f32 %v1349, %v1351
    %v1382 = vadd.f32 %v1381, %v1353
    %v1383 = vadd.f32 %v1382, %v1355
    %v1384 = vadd.f32 %v1383, %v1357
    %v1385 = vadd.f32 %v1384, %v1359
    %v1386 = vadd.f32 %v1385, %v1361
    %v1387 = vadd.f32 %v1386, %v1363
    %v1388 = vadd.f32 %v1387, %v1365
    %v1389 = vadd.f32 %v1388, %v1367
    %v1390 = vadd.f32 %v1389, %v1369
    %v1391 = vadd.f32 %v1390, %v1371
    %v1392 = vadd.f32 %v1391, %v1373
    %v1393 = vadd.f32 %v1392, %v1375
    %v1394 = vadd.f32 %v1393, %v1377
    %v1395 = vadd.f32 %v1394, %v1379
    %v1396 = vrot.slane %v1395, 4
    %v1397 = vadd.f32 %v1395, %v1396
    %v1398 = vrot.slane %v1397, 2
    %v1399 = vadd.f32 %v1397, %v1398
    %v1400 = vrot.slane %v1399, 1
    %v1401 = vadd.f32 %v1399, %v1400
    %v1402 = vadd.f32 %v1350, %v1352
    %v1403 = vadd.f32 %v1402, %v1354
    %v1404 = vadd.f32 %v1403, %v1356
    %v1405 = vadd.f32 %v1404, %v1358
    %v1406 = vadd.f32 %v1405, %v1360
    %v1407 = vadd.f32 %v1406, %v1362
    %v1408 = vadd.f32 %v1407, %v1364
    %v1409 = vadd.f32 %v1408, %v1366
    %v1410 = vadd.f32 %v1409, %v1368
    %v1411 = vadd.f32 %v1410, %v1370
    %v1412 = vadd.f32 %v1411, %v1372
    %v1413 = vadd.f32 %v1412, %v1374
    %v1414 = vadd.f32 %v1413, %v1376
    %v1415 = vadd.f32 %v1414, %v1378
    %v1416 = vadd.f32 %v1415, %v1380
    %v1417 = vrot.slane %v1416, 4
    %v1418 = vadd.f32 %v1416, %v1417
    %v1419 = vrot.slane %v1418, 2
    %v1420 = vadd.f32 %v1418, %v1419
    %v1421 = vrot.slane %v1420, 1
    %v1422 = vadd.f32 %v1420, %v1421
    %v1423 = vmul.f32 %v1401, %v380
    %v1424 = vmul.f32 %v1422, %v380
    %v1425 = vmul.f32 %v1347, %v1347
    %v1426 = vmul.f32 %v1348, %v1348
    %v1427 = vsub.f32 %v1423, %v1425
    %v1428 = vsub.f32 %v1424, %v1426
    %v1429 = vmax.f32 %v1427, 0.0
    %v1430 = vmax.f32 %v1428, 0.0
    %v1431 = vld [vmem:[%s11] sm:$0x3]
    %v1432 = vadd.f32 %v1429, 1e-05
    %v1433 = vadd.f32 %v1430, 1e-05
    %v1434 = vrsqrt.pop %v1432
    %v1435 = vrsqrt.pop %v1433
    %v1438 = vcombine.low %v1434, %v1435
    %v1440 = vunpack.c.l.s4 1966171168
    %v1441 = vunpack.c.0.s8 %v1440
    %v1442 = vlaneseq
    %v1443 = vshrl.u32 %v1442, 7
    %v1444 = vsub.s32 %v1441, %v1443
    %v1445 = vrot.slane %v1438, %v1444
    %v1447 = vunpack.c.l.s4 1966171168
    %v1448 = vunpack.c.0.s8 %v1447
    %v1449 = vlaneseq
    %v1450 = vshrl.u32 %v1449, 7
    %v1451 = vsub.s32 %v1448, %v1450
    %v1452 = vrot.slane %v1445, %v1451
    %v1454 = vmul.f32 %v1431, %v1452
    %v1455 = vld [vmem:[%s12] sm:$0x3]
    %v1457 = vlaneseq
    %v1458 = vshrl.u32 %v1457, 7
    %v1459 = vsub.s32 0, %v1458
    %v1460 = vrot.slane %v1454, %v1459
    %v1461 = vlaneseq
    %v1462 = vshrl.u32 %v1461, 7
    %v1463 = vsub.s32 1, %v1462
    %v1464 = vrot.slane %v1454, %v1463
    %v1467 = vmul.f32 %v1347, %v1460
    %v1468 = vmul.f32 %v1348, %v1464
    %v1471 = vcombine.low %v1467, %v1468
    %v1473 = vunpack.c.l.s4 1966171168
    %v1474 = vunpack.c.0.s8 %v1473
    %v1475 = vlaneseq
    %v1476 = vshrl.u32 %v1475, 7
    %v1477 = vsub.s32 %v1474, %v1476
    %v1478 = vrot.slane %v1471, %v1477
    %v1480 = vunpack.c.l.s4 1966171168
    %v1481 = vunpack.c.0.s8 %v1480
    %v1482 = vlaneseq
    %v1483 = vshrl.u32 %v1482, 7
    %v1484 = vsub.s32 %v1481, %v1483
    %v1485 = vrot.slane %v1478, %v1484
    %v1487 = vsub.f32 %v1455, %v1485
    %v1488 = vmul.f32 %v1227, %v1460
    %v1489 = vmul.f32 %v1229, %v1464
    %v1490 = vmul.f32 %v1231, %v1460
    %v1491 = vmul.f32 %v1233, %v1464
    %v1492 = vmul.f32 %v1237, %v1460
    %v1493 = vmul.f32 %v1239, %v1464
    %v1494 = vmul.f32 %v1241, %v1460
    %v1495 = vmul.f32 %v1243, %v1464
    %v1496 = vmul.f32 %v1247, %v1460
    %v1497 = vmul.f32 %v1249, %v1464
    %v1498 = vmul.f32 %v1251, %v1460
    %v1499 = vmul.f32 %v1253, %v1464
    %v1500 = vmul.f32 %v1257, %v1460
    %v1501 = vmul.f32 %v1259, %v1464
    %v1502 = vmul.f32 %v1261, %v1460
    %v1503 = vmul.f32 %v1263, %v1464
    %v1504 = vmul.f32 %v1267, %v1460
    %v1505 = vmul.f32 %v1269, %v1464
    %v1506 = vmul.f32 %v1271, %v1460
    %v1507 = vmul.f32 %v1273, %v1464
    %v1508 = vmul.f32 %v1277, %v1460
    %v1509 = vmul.f32 %v1279, %v1464
    %v1510 = vmul.f32 %v1281, %v1460
    %v1511 = vmul.f32 %v1283, %v1464
    %v1512 = vmul.f32 %v1287, %v1460
    %v1513 = vmul.f32 %v1289, %v1464
    %v1514 = vmul.f32 %v1291, %v1460
    %v1515 = vmul.f32 %v1293, %v1464
    %v1516 = vmul.f32 %v1297, %v1460
    %v1517 = vmul.f32 %v1299, %v1464
    %v1518 = vmul.f32 %v1301, %v1460
    %v1519 = vmul.f32 %v1303, %v1464
    %v1521 = vlaneseq
    %v1522 = vshrl.u32 %v1521, 7
    %v1523 = vsub.s32 0, %v1522
    %v1524 = vrot.slane %v1487, %v1523
    %v1525 = vlaneseq
    %v1526 = vshrl.u32 %v1525, 7
    %v1527 = vsub.s32 1, %v1526
    %v1528 = vrot.slane %v1487, %v1527
    %v1531 = vadd.f32 %v1488, %v1524
    %v1532 = vadd.f32 %v1489, %v1528
    %v1533 = vadd.f32 %v1490, %v1524
    %v1534 = vadd.f32 %v1491, %v1528
    %v1535 = vadd.f32 %v1492, %v1524
    %v1536 = vadd.f32 %v1493, %v1528
    %v1537 = vadd.f32 %v1494, %v1524
    %v1538 = vadd.f32 %v1495, %v1528
    %v1539 = vadd.f32 %v1496, %v1524
    %v1540 = vadd.f32 %v1497, %v1528
    %v1541 = vadd.f32 %v1498, %v1524
    %v1542 = vadd.f32 %v1499, %v1528
    %v1543 = vadd.f32 %v1500, %v1524
    %v1544 = vadd.f32 %v1501, %v1528
    %v1545 = vadd.f32 %v1502, %v1524
    %v1546 = vadd.f32 %v1503, %v1528
    %v1547 = vadd.f32 %v1504, %v1524
    %v1548 = vadd.f32 %v1505, %v1528
    %v1549 = vadd.f32 %v1506, %v1524
    %v1550 = vadd.f32 %v1507, %v1528
    %v1551 = vadd.f32 %v1508, %v1524
    %v1552 = vadd.f32 %v1509, %v1528
    %v1553 = vadd.f32 %v1510, %v1524
    %v1554 = vadd.f32 %v1511, %v1528
    %v1555 = vadd.f32 %v1512, %v1524
    %v1556 = vadd.f32 %v1513, %v1528
    %v1557 = vadd.f32 %v1514, %v1524
    %v1558 = vadd.f32 %v1515, %v1528
    %v1559 = vadd.f32 %v1516, %v1524
    %v1560 = vadd.f32 %v1517, %v1528
    %v1561 = vadd.f32 %v1518, %v1524
    %v1562 = vadd.f32 %v1519, %v1528
    %v1563 = vmax.f32 %v1531, 0.0
    %v1564 = vmax.f32 %v1532, 0.0
    %v1565 = vmax.f32 %v1533, 0.0
    %v1566 = vmax.f32 %v1534, 0.0
    %v1567 = vmax.f32 %v1535, 0.0
    %v1568 = vmax.f32 %v1536, 0.0
    %v1569 = vmax.f32 %v1537, 0.0
    %v1570 = vmax.f32 %v1538, 0.0
    %v1571 = vmax.f32 %v1539, 0.0
    %v1572 = vmax.f32 %v1540, 0.0
    %v1573 = vmax.f32 %v1541, 0.0
    %v1574 = vmax.f32 %v1542, 0.0
    %v1575 = vmax.f32 %v1543, 0.0
    %v1576 = vmax.f32 %v1544, 0.0
    %v1577 = vmax.f32 %v1545, 0.0
    %v1578 = vmax.f32 %v1546, 0.0
    %v1579 = vmax.f32 %v1547, 0.0
    %v1580 = vmax.f32 %v1548, 0.0
    %v1581 = vmax.f32 %v1549, 0.0
    %v1582 = vmax.f32 %v1550, 0.0
    %v1583 = vmax.f32 %v1551, 0.0
    %v1584 = vmax.f32 %v1552, 0.0
    %v1585 = vmax.f32 %v1553, 0.0
    %v1586 = vmax.f32 %v1554, 0.0
    %v1587 = vmax.f32 %v1555, 0.0
    %v1588 = vmax.f32 %v1556, 0.0
    %v1589 = vmax.f32 %v1557, 0.0
    %v1590 = vmax.f32 %v1558, 0.0
    %v1591 = vmax.f32 %v1559, 0.0
    %v1592 = vmax.f32 %v1560, 0.0
    %v1593 = vmax.f32 %v1561, 0.0
    %v1594 = vmax.f32 %v1562, 0.0
    %v1595 = vpack.c.bf16 %v1565, %v1563
    %v1596 = vpack.c.bf16 %v1566, %v1564
    %v1597 = vpack.c.bf16 %v1569, %v1567
    %v1598 = vpack.c.bf16 %v1570, %v1568
    %v1599 = vpack.c.bf16 %v1573, %v1571
    %v1600 = vpack.c.bf16 %v1574, %v1572
    %v1601 = vpack.c.bf16 %v1577, %v1575
    %v1602 = vpack.c.bf16 %v1578, %v1576
    %v1603 = vpack.c.bf16 %v1581, %v1579
    %v1604 = vpack.c.bf16 %v1582, %v1580
    %v1605 = vpack.c.bf16 %v1585, %v1583
    %v1606 = vpack.c.bf16 %v1586, %v1584
    %v1607 = vpack.c.bf16 %v1589, %v1587
    %v1608 = vpack.c.bf16 %v1590, %v1588
    %v1609 = vpack.c.bf16 %v1593, %v1591
    %v1610 = vpack.c.bf16 %v1594, %v1592
    %v1611 = vld [vmem:[#allocation11] sm:$0xff]
    %v1612 = vld [vmem:[#allocation11 + $0x8] sm:$0xff]
    %v1613 = vld [vmem:[#allocation11 + $0x10] sm:$0xff]
    %v1614 = vld [vmem:[#allocation11 + $0x18] sm:$0xff]
    %v1615 = vld [vmem:[#allocation11 + $0x20] sm:$0xff]
    %v1616 = vld [vmem:[#allocation11 + $0x28] sm:$0xff]
    %v1617 = vld [vmem:[#allocation11 + $0x30] sm:$0xff]
    %v1618 = vld [vmem:[#allocation11 + $0x38] sm:$0xff]
    %v1619 = vld [vmem:[#allocation11 + $0x40] sm:$0xff]
    %v1620 = vld [vmem:[#allocation11 + $0x48] sm:$0xff]
    %v1621 = vld [vmem:[#allocation11 + $0x50] sm:$0xff]
    %v1622 = vld [vmem:[#allocation11 + $0x58] sm:$0xff]
    %v1623 = vld [vmem:[#allocation11 + $0x60] sm:$0xff]
    %v1624 = vld [vmem:[#allocation11 + $0x68] sm:$0xff]
    %v1625 = vld [vmem:[#allocation11 + $0x70] sm:$0xff]
    %v1626 = vld [vmem:[#allocation11 + $0x78] sm:$0xff]
    %v1627 = vld [vmem:[#allocation11 + $0x80] sm:$0xff]
    %v1628 = vld [vmem:[#allocation11 + $0x88] sm:$0xff]
    %v1629 = vld [vmem:[#allocation11 + $0x90] sm:$0xff]
    %v1630 = vld [vmem:[#allocation11 + $0x98] sm:$0xff]
    %v1631 = vld [vmem:[#allocation11 + $0xa0] sm:$0xff]
    %v1632 = vld [vmem:[#allocation11 + $0xa8] sm:$0xff]
    %v1633 = vld [vmem:[#allocation11 + $0xb0] sm:$0xff]
    %v1634 = vld [vmem:[#allocation11 + $0xb8] sm:$0xff]
    %v1635 = vld [vmem:[#allocation11 + $0xc0] sm:$0xff]
    %v1636 = vld [vmem:[#allocation11 + $0xc8] sm:$0xff]
    %v1637 = vld [vmem:[#allocation11 + $0xd0] sm:$0xff]
    %v1638 = vld [vmem:[#allocation11 + $0xd8] sm:$0xff]
    %v1639 = vld [vmem:[#allocation11 + $0xe0] sm:$0xff]
    %v1640 = vld [vmem:[#allocation11 + $0xe8] sm:$0xff]
    %v1641 = vld [vmem:[#allocation11 + $0xf0] sm:$0xff]
    %v1642 = vld [vmem:[#allocation11 + $0xf8] sm:$0xff]
    %v1643 = vld [vmem:[%s14] sm:$0x3]
    %v1645 = vlaneseq
    %v1646 = vshrl.u32 %v1645, 7
    %v1647 = vsub.s32 0, %v1646
    %v1648 = vrot.slane %v1643, %v1647
    %v1649 = vlaneseq
    %v1650 = vshrl.u32 %v1649, 7
    %v1651 = vsub.s32 1, %v1650
    %v1652 = vrot.slane %v1643, %v1651
    %v1687 = vunpack.c.l.b16 %v1611
    %v1688 = vunpack.c.h.b16 %v1611
    %v1689 = vunpack.c.l.b16 %v1612
    %v1690 = vunpack.c.h.b16 %v1612
    %v1691 = vunpack.c.l.b16 %v1613
    %v1692 = vunpack.c.h.b16 %v1613
    %v1693 = vunpack.c.l.b16 %v1614
    %v1694 = vunpack.c.h.b16 %v1614
    %v1695 = vunpack.c.l.b16 %v1615
    %v1696 = vunpack.c.h.b16 %v1615
    %v1697 = vunpack.c.l.b16 %v1616
    %v1698 = vunpack.c.h.b16 %v1616
    %v1699 = vunpack.c.l.b16 %v1617
    %v1700 = vunpack.c.h.b16 %v1617
    %v1701 = vunpack.c.l.b16 %v1618
    %v1702 = vunpack.c.h.b16 %v1618
    %v1703 = vunpack.c.l.b16 %v1619
    %v1704 = vunpack.c.h.b16 %v1619
    %v1705 = vunpack.c.l.b16 %v1620
    %v1706 = vunpack.c.h.b16 %v1620
    %v1707 = vunpack.c.l.b16 %v1621
    %v1708 = vunpack.c.h.b16 %v1621
    %v1709 = vunpack.c.l.b16 %v1622
    %v1710 = vunpack.c.h.b16 %v1622
    %v1711 = vunpack.c.l.b16 %v1623
    %v1712 = vunpack.c.h.b16 %v1623
    %v1713 = vunpack.c.l.b16 %v1624
    %v1714 = vunpack.c.h.b16 %v1624
    %v1715 = vunpack.c.l.b16 %v1625
    %v1716 = vunpack.c.h.b16 %v1625
    %v1717 = vunpack.c.l.b16 %v1626
    %v1718 = vunpack.c.h.b16 %v1626
    %v1719 = vunpack.c.l.b16 %v1627
    %v1720 = vunpack.c.h.b16 %v1627
    %v1721 = vunpack.c.l.b16 %v1628
    %v1722 = vunpack.c.h.b16 %v1628
    %v1723 = vunpack.c.l.b16 %v1629
    %v1724 = vunpack.c.h.b16 %v1629
    %v1725 = vunpack.c.l.b16 %v1630
    %v1726 = vunpack.c.h.b16 %v1630
    %v1727 = vunpack.c.l.b16 %v1631
    %v1728 = vunpack.c.h.b16 %v1631
    %v1729 = vunpack.c.l.b16 %v1632
    %v1730 = vunpack.c.h.b16 %v1632
    %v1731 = vunpack.c.l.b16 %v1633
    %v1732 = vunpack.c.h.b16 %v1633
    %v1733 = vunpack.c.l.b16 %v1634
    %v1734 = vunpack.c.h.b16 %v1634
    %v1735 = vunpack.c.l.b16 %v1635
    %v1736 = vunpack.c.h.b16 %v1635
    %v1737 = vunpack.c.l.b16 %v1636
    %v1738 = vunpack.c.h.b16 %v1636
    %v1739 = vunpack.c.l.b16 %v1637
    %v1740 = vunpack.c.h.b16 %v1637
    %v1741 = vunpack.c.l.b16 %v1638
    %v1742 = vunpack.c.h.b16 %v1638
    %v1743 = vunpack.c.l.b16 %v1639
    %v1744 = vunpack.c.h.b16 %v1639
    %v1745 = vunpack.c.l.b16 %v1640
    %v1746 = vunpack.c.h.b16 %v1640
    %v1747 = vunpack.c.l.b16 %v1641
    %v1748 = vunpack.c.h.b16 %v1641
    %v1749 = vunpack.c.l.b16 %v1642
    %v1750 = vunpack.c.h.b16 %v1642
    %v1751 = vpack.c.b16 %v1689, %v1687
    %v1752 = vpack.c.b16 %v1690, %v1688
    %v1753 = vpack.c.b16 %v1693, %v1691
    %v1754 = vpack.c.b16 %v1694, %v1692
    %v1755 = vpack.c.b16 %v1697, %v1695
    %v1756 = vpack.c.b16 %v1698, %v1696
    %v1757 = vpack.c.b16 %v1701, %v1699
    %v1758 = vpack.c.b16 %v1702, %v1700
    %v1759 = vpack.c.b16 %v1705, %v1703
    %v1760 = vpack.c.b16 %v1706, %v1704
    %v1761 = vpack.c.b16 %v1709, %v1707
    %v1762 = vpack.c.b16 %v1710, %v1708
    %v1763 = vpack.c.b16 %v1713, %v1711
    %v1764 = vpack.c.b16 %v1714, %v1712
    %v1765 = vpack.c.b16 %v1717, %v1715
    %v1766 = vpack.c.b16 %v1718, %v1716
    %v1767 = vpack.c.b16 %v1721, %v1719
    %v1768 = vpack.c.b16 %v1722, %v1720
    %v1769 = vpack.c.b16 %v1725, %v1723
    %v1770 = vpack.c.b16 %v1726, %v1724
    %v1771 = vpack.c.b16 %v1729, %v1727
    %v1772 = vpack.c.b16 %v1730, %v1728
    %v1773 = vpack.c.b16 %v1733, %v1731
    %v1774 = vpack.c.b16 %v1734, %v1732
    %v1775 = vpack.c.b16 %v1737, %v1735
    %v1776 = vpack.c.b16 %v1738, %v1736
    %v1777 = vpack.c.b16 %v1741, %v1739
    %v1778 = vpack.c.b16 %v1742, %v1740
    %v1779 = vpack.c.b16 %v1745, %v1743
    %v1780 = vpack.c.b16 %v1746, %v1744
    %v1781 = vpack.c.b16 %v1749, %v1747
    %v1782 = vpack.c.b16 %v1750, %v1748
    %1815 = vmatprep.subr.bf16.mxu0 %v1752
    %1816 = vmatpush1.bf16.msra.mxu0 %v1751
    %1817 = vmatprep.subr.bf16.mxu0 %v1754
    %1818 = vmatpush1.bf16.msra.mxu0 %v1753
    %1819 = vmatprep.subr.bf16.mxu0 %v1756
    %1820 = vmatpush1.bf16.msra.mxu0 %v1755
    %1821 = vmatprep.subr.bf16.mxu0 %v1758
    %1822 = vmatpush1.bf16.msra.mxu0 %v1757
    %1823 = vmatprep.subr.bf16.mxu0 %v1760
    %1824 = vmatpush1.bf16.msra.mxu0 %v1759
    %1825 = vmatprep.subr.bf16.mxu0 %v1762
    %1826 = vmatpush1.bf16.msra.mxu0 %v1761
    %1827 = vmatprep.subr.bf16.mxu0 %v1764
    %1828 = vmatpush1.bf16.msra.mxu0 %v1763
    %1829 = vmatprep.subr.bf16.mxu0 %v1766
    %1830 = vmatpush1.bf16.msra.mxu0 %v1765
    %1831 = vmatprep.subr.bf16.mxu0 %v1768
    %1832 = vmatpush1.bf16.msra.mxu0 %v1767
    %1833 = vmatprep.subr.bf16.mxu0 %v1770
    %1834 = vmatpush1.bf16.msra.mxu0 %v1769
    %1835 = vmatprep.subr.bf16.mxu0 %v1772
    %1836 = vmatpush1.bf16.msra.mxu0 %v1771
    %1837 = vmatprep.subr.bf16.mxu0 %v1774
    %1838 = vmatpush1.bf16.msra.mxu0 %v1773
    %1839 = vmatprep.subr.bf16.mxu0 %v1776
    %1840 = vmatpush1.bf16.msra.mxu0 %v1775
    %1841 = vmatprep.subr.bf16.mxu0 %v1778
    %1842 = vmatpush1.bf16.msra.mxu0 %v1777
    %1843 = vmatprep.subr.bf16.mxu0 %v1780
    %1844 = vmatpush1.bf16.msra.mxu0 %v1779
    %1845 = vmatprep.subr.bf16.mxu0 %v1782
    %1846 = vmatpush1.bf16.msra.mxu0 %v1781
    %1847 = vmatprep.mubr.bf16.mxu0 %v1596
    %1848 = vmatmul.mubr.bf16.gmra.mrb[0].mxu0 %v1595
    %v1849 = vpop.f32.mrb[0].mxu0
    %v1850 = vadd.f32 %v1648, %v1849
    %v1851 = vpop.f32.mrb[0].mxu0
    %v1852 = vadd.f32 %v1652, %v1851
    %v1853 = vpop.f32.mrb[0].mxu0
    %v1854 = vadd.f32 %v1648, %v1853
    %v1855 = vpop.f32.mrb[0].mxu0
    %v1856 = vadd.f32 %v1652, %v1855
    %1857 = vmatprep.mubr.bf16.mxu0 %v1598
    %1858 = vmatmul.mubr.bf16.gmra.mrb[0].mxu0 %v1597
    %v1859 = vpop.f32.mrb[0].mxu0
    %v1860 = vadd.f32 %v1648, %v1859
    %v1861 = vpop.f32.mrb[0].mxu0
    %v1862 = vadd.f32 %v1652, %v1861
    %v1863 = vpop.f32.mrb[0].mxu0
    %v1864 = vadd.f32 %v1648, %v1863
    %v1865 = vpop.f32.mrb[0].mxu0
    %v1866 = vadd.f32 %v1652, %v1865
    %1867 = vmatprep.mubr.bf16.mxu0 %v1600
    %1868 = vmatmul.mubr.bf16.gmra.mrb[0].mxu0 %v1599
    %v1869 = vpop.f32.mrb[0].mxu0
    %v1870 = vadd.f32 %v1648, %v1869
    %v1871 = vpop.f32.mrb[0].mxu0
    %v1872 = vadd.f32 %v1652, %v1871
    %v1873 = vpop.f32.mrb[0].mxu0
    %v1874 = vadd.f32 %v1648, %v1873
    %v1875 = vpop.f32.mrb[0].mxu0
    %v1876 = vadd.f32 %v1652, %v1875
    %1877 = vmatprep.mubr.bf16.mxu0 %v1602
    %1878 = vmatmul.mubr.bf16.gmra.mrb[0].mxu0 %v1601
    %v1879 = vpop.f32.mrb[0].mxu0
    %v1880 = vadd.f32 %v1648, %v1879
    %v1881 = vpop.f32.mrb[0].mxu0
    %v1882 = vadd.f32 %v1652, %v1881
    %v1883 = vpop.f32.mrb[0].mxu0
    %v1884 = vadd.f32 %v1648, %v1883
    %v1885 = vpop.f32.mrb[0].mxu0
    %v1886 = vadd.f32 %v1652, %v1885
    %1887 = vmatprep.mubr.bf16.mxu0 %v1604
    %1888 = vmatmul.mubr.bf16.gmra.mrb[0].mxu0 %v1603
    %v1889 = vpop.f32.mrb[0].mxu0
    %v1890 = vadd.f32 %v1648, %v1889
    %v1891 = vpop.f32.mrb[0].mxu0
    %v1892 = vadd.f32 %v1652, %v1891
    %v1893 = vpop.f32.mrb[0].mxu0
    %v1894 = vadd.f32 %v1648, %v1893
    %v1895 = vpop.f32.mrb[0].mxu0
    %v1896 = vadd.f32 %v1652, %v1895
    %1897 = vmatprep.mubr.bf16.mxu0 %v1606
    %1898 = vmatmul.mubr.bf16.gmra.mrb[0].mxu0 %v1605
    %v1899 = vpop.f32.mrb[0].mxu0
    %v1900 = vadd.f32 %v1648, %v1899
    %v1901 = vpop.f32.mrb[0].mxu0
    %v1902 = vadd.f32 %v1652, %v1901
    %v1903 = vpop.f32.mrb[0].mxu0
    %v1904 = vadd.f32 %v1648, %v1903
    %v1905 = vpop.f32.mrb[0].mxu0
    %v1906 = vadd.f32 %v1652, %v1905
    %1907 = vmatprep.mubr.bf16.mxu0 %v1608
    %1908 = vmatmul.mubr.bf16.gmra.mrb[0].mxu0 %v1607
    %v1909 = vpop.f32.mrb[0].mxu0
    %v1910 = vadd.f32 %v1648, %v1909
    %v1911 = vpop.f32.mrb[0].mxu0
    %v1912 = vadd.f32 %v1652, %v1911
    %v1913 = vpop.f32.mrb[0].mxu0
    %v1914 = vadd.f32 %v1648, %v1913
    %v1915 = vpop.f32.mrb[0].mxu0
    %v1916 = vadd.f32 %v1652, %v1915
    %1917 = vmatprep.mubr.bf16.mxu0 %v1610
    %1918 = vmatmul.mubr.bf16.gmra.mrb[0].mxu0 %v1609
    %v1919 = vpop.f32.mrb[0].mxu0
    %v1920 = vadd.f32 %v1648, %v1919
    %v1921 = vpop.f32.mrb[0].mxu0
    %v1922 = vadd.f32 %v1652, %v1921
    %v1923 = vpop.f32.mrb[0].mxu0
    %v1924 = vadd.f32 %v1648, %v1923
    %v1925 = vpop.f32.mrb[0].mxu0
    %v1926 = vadd.f32 %v1652, %v1925
    %1927 = vdwg.mxu0
    %v1928 = vmul.f32 %v1850, 0.5
    %v1929 = vmul.f32 %v1852, 0.5
    %v1930 = vmul.f32 %v1854, 0.5
    %v1931 = vmul.f32 %v1856, 0.5
    %v1932 = vmul.f32 %v1860, 0.5
    %v1933 = vmul.f32 %v1862, 0.5
    %v1934 = vmul.f32 %v1864, 0.5
    %v1935 = vmul.f32 %v1866, 0.5
    %v1936 = vmul.f32 %v1870, 0.5
    %v1937 = vmul.f32 %v1872, 0.5
    %v1938 = vmul.f32 %v1874, 0.5
    %v1939 = vmul.f32 %v1876, 0.5
    %v1940 = vmul.f32 %v1880, 0.5
    %v1941 = vmul.f32 %v1882, 0.5
    %v1942 = vmul.f32 %v1884, 0.5
    %v1943 = vmul.f32 %v1886, 0.5
    %v1944 = vmul.f32 %v1890, 0.5
    %v1945 = vmul.f32 %v1892, 0.5
    %v1946 = vmul.f32 %v1894, 0.5
    %v1947 = vmul.f32 %v1896, 0.5
    %v1948 = vmul.f32 %v1900, 0.5
    %v1949 = vmul.f32 %v1902, 0.5
    %v1950 = vmul.f32 %v1904, 0.5
    %v1951 = vmul.f32 %v1906, 0.5
    %v1952 = vmul.f32 %v1910, 0.5
    %v1953 = vmul.f32 %v1912, 0.5
    %v1954 = vmul.f32 %v1914, 0.5
    %v1955 = vmul.f32 %v1916, 0.5
    %v1956 = vmul.f32 %v1920, 0.5
    %v1957 = vmul.f32 %v1922, 0.5
    %v1958 = vmul.f32 %v1924, 0.5
    %v1959 = vmul.f32 %v1926, 0.5
    %v1960 = vtanh.pop %v1928
    %v1961 = vtanh.pop %v1929
    %v1962 = vtanh.pop %v1930
    %v1963 = vtanh.pop %v1931
    %v1964 = vtanh.pop %v1932
    %v1965 = vtanh.pop %v1933
    %v1966 = vtanh.pop %v1934
    %v1967 = vtanh.pop %v1935
    %v1968 = vtanh.pop %v1936
    %v1969 = vtanh.pop %v1937
    %v1970 = vtanh.pop %v1938
    %v1971 = vtanh.pop %v1939
    %v1972 = vtanh.pop %v1940
    %v1973 = vtanh.pop %v1941
    %v1974 = vtanh.pop %v1942
    %v1975 = vtanh.pop %v1943
    %v1976 = vtanh.pop %v1944
    %v1977 = vtanh.pop %v1945
    %v1978 = vtanh.pop %v1946
    %v1979 = vtanh.pop %v1947
    %v1980 = vtanh.pop %v1948
    %v1981 = vtanh.pop %v1949
    %v1982 = vtanh.pop %v1950
    %v1983 = vtanh.pop %v1951
    %v1984 = vtanh.pop %v1952
    %v1985 = vtanh.pop %v1953
    %v1986 = vtanh.pop %v1954
    %v1987 = vtanh.pop %v1955
    %v1988 = vtanh.pop %v1956
    %v1989 = vtanh.pop %v1957
    %v1990 = vtanh.pop %v1958
    %v1991 = vtanh.pop %v1959
    %v1992 = vadd.f32 %v1960, 1.0
    %v1993 = vadd.f32 %v1961, 1.0
    %v1994 = vadd.f32 %v1962, 1.0
    %v1995 = vadd.f32 %v1963, 1.0
    %v1996 = vadd.f32 %v1964, 1.0
    %v1997 = vadd.f32 %v1965, 1.0
    %v1998 = vadd.f32 %v1966, 1.0
    %v1999 = vadd.f32 %v1967, 1.0
    %v2000 = vadd.f32 %v1968, 1.0
    %v2001 = vadd.f32 %v1969, 1.0
    %v2002 = vadd.f32 %v1970, 1.0
    %v2003 = vadd.f32 %v1971, 1.0
    %v2004 = vadd.f32 %v1972, 1.0
    %v2005 = vadd.f32 %v1973, 1.0
    %v2006 = vadd.f32 %v1974, 1.0
    %v2007 = vadd.f32 %v1975, 1.0
    %v2008 = vadd.f32 %v1976, 1.0
    %v2009 = vadd.f32 %v1977, 1.0
    %v2010 = vadd.f32 %v1978, 1.0
    %v2011 = vadd.f32 %v1979, 1.0
    %v2012 = vadd.f32 %v1980, 1.0
    %v2013 = vadd.f32 %v1981, 1.0
    %v2014 = vadd.f32 %v1982, 1.0
    %v2015 = vadd.f32 %v1983, 1.0
    %v2016 = vadd.f32 %v1984, 1.0
    %v2017 = vadd.f32 %v1985, 1.0
    %v2018 = vadd.f32 %v1986, 1.0
    %v2019 = vadd.f32 %v1987, 1.0
    %v2020 = vadd.f32 %v1988, 1.0
    %v2021 = vadd.f32 %v1989, 1.0
    %v2022 = vadd.f32 %v1990, 1.0
    %v2023 = vadd.f32 %v1991, 1.0
    %v2024 = vmul.f32 %v1992, 0.5
    %v2025 = vmul.f32 %v1993, 0.5
    %v2026 = vmul.f32 %v1994, 0.5
    %v2027 = vmul.f32 %v1995, 0.5
    %v2028 = vmul.f32 %v1996, 0.5
    %v2029 = vmul.f32 %v1997, 0.5
    %v2030 = vmul.f32 %v1998, 0.5
    %v2031 = vmul.f32 %v1999, 0.5
    %v2032 = vmul.f32 %v2000, 0.5
    %v2033 = vmul.f32 %v2001, 0.5
    %v2034 = vmul.f32 %v2002, 0.5
    %v2035 = vmul.f32 %v2003, 0.5
    %v2036 = vmul.f32 %v2004, 0.5
    %v2037 = vmul.f32 %v2005, 0.5
    %v2038 = vmul.f32 %v2006, 0.5
    %v2039 = vmul.f32 %v2007, 0.5
    %v2040 = vmul.f32 %v2008, 0.5
    %v2041 = vmul.f32 %v2009, 0.5
    %v2042 = vmul.f32 %v2010, 0.5
    %v2043 = vmul.f32 %v2011, 0.5
    %v2044 = vmul.f32 %v2012, 0.5
    %v2045 = vmul.f32 %v2013, 0.5
    %v2046 = vmul.f32 %v2014, 0.5
    %v2047 = vmul.f32 %v2015, 0.5
    %v2048 = vmul.f32 %v2016, 0.5
    %v2049 = vmul.f32 %v2017, 0.5
    %v2050 = vmul.f32 %v2018, 0.5
    %v2051 = vmul.f32 %v2019, 0.5
    %v2052 = vmul.f32 %v2020, 0.5
    %v2053 = vmul.f32 %v2021, 0.5
    %v2054 = vmul.f32 %v2022, 0.5
    %v2055 = vmul.f32 %v2023, 0.5
    %v2056 = vpack.c.bf16 %v2026, %v2024
    %v2057 = vpack.c.bf16 %v2027, %v2025
    %v2058 = vpack.c.bf16 %v2030, %v2028
    %v2059 = vpack.c.bf16 %v2031, %v2029
    %v2060 = vpack.c.bf16 %v2034, %v2032
    %v2061 = vpack.c.bf16 %v2035, %v2033
    %v2062 = vpack.c.bf16 %v2038, %v2036
    %v2063 = vpack.c.bf16 %v2039, %v2037
    %v2064 = vpack.c.bf16 %v2042, %v2040
    %v2065 = vpack.c.bf16 %v2043, %v2041
    %v2066 = vpack.c.bf16 %v2046, %v2044
    %v2067 = vpack.c.bf16 %v2047, %v2045
    %v2068 = vpack.c.bf16 %v2050, %v2048
    %v2069 = vpack.c.bf16 %v2051, %v2049
    %v2070 = vpack.c.bf16 %v2054, %v2052
    %v2071 = vpack.c.bf16 %v2055, %v2053
    %v2088 = vunpack.c.l.b16 %v2056
    %v2089 = vunpack.c.l.b16 %v2057
    %v2090 = vunpack.c.h.b16 %v2056
    %v2091 = vunpack.c.h.b16 %v2057
    %v2092 = vunpack.c.l.b16 %v2058
    %v2093 = vunpack.c.l.b16 %v2059
    %v2094 = vunpack.c.h.b16 %v2058
    %v2095 = vunpack.c.h.b16 %v2059
    %v2096 = vunpack.c.l.b16 %v2060
    %v2097 = vunpack.c.l.b16 %v2061
    %v2098 = vunpack.c.h.b16 %v2060
    %v2099 = vunpack.c.h.b16 %v2061
    %v2100 = vunpack.c.l.b16 %v2062
    %v2101 = vunpack.c.l.b16 %v2063
    %v2102 = vunpack.c.h.b16 %v2062
    %v2103 = vunpack.c.h.b16 %v2063
    %v2104 = vunpack.c.l.b16 %v2064
    %v2105 = vunpack.c.l.b16 %v2065
    %v2106 = vunpack.c.h.b16 %v2064
    %v2107 = vunpack.c.h.b16 %v2065
    %v2108 = vunpack.c.l.b16 %v2066
    %v2109 = vunpack.c.l.b16 %v2067
    %v2110 = vunpack.c.h.b16 %v2066
    %v2111 = vunpack.c.h.b16 %v2067
    %v2112 = vunpack.c.l.b16 %v2068
    %v2113 = vunpack.c.l.b16 %v2069
    %v2114 = vunpack.c.h.b16 %v2068
    %v2115 = vunpack.c.h.b16 %v2069
    %v2116 = vunpack.c.l.b16 %v2070
    %v2117 = vunpack.c.l.b16 %v2071
    %v2118 = vunpack.c.h.b16 %v2070
    %v2119 = vunpack.c.h.b16 %v2071
    %v2120 = vpack.c.b16 %v2089, %v2088
    %v2121 = vpack.c.b16 %v2091, %v2090
    %v2122 = vpack.c.b16 %v2093, %v2092
    %v2123 = vpack.c.b16 %v2095, %v2094
    %v2124 = vpack.c.b16 %v2097, %v2096
    %v2125 = vpack.c.b16 %v2099, %v2098
    %v2126 = vpack.c.b16 %v2101, %v2100
    %v2127 = vpack.c.b16 %v2103, %v2102
    %v2128 = vpack.c.b16 %v2105, %v2104
    %v2129 = vpack.c.b16 %v2107, %v2106
    %v2130 = vpack.c.b16 %v2109, %v2108
    %v2131 = vpack.c.b16 %v2111, %v2110
    %v2132 = vpack.c.b16 %v2113, %v2112
    %v2133 = vpack.c.b16 %v2115, %v2114
    %v2134 = vpack.c.b16 %v2117, %v2116
    %v2135 = vpack.c.b16 %v2119, %v2118
    %2152 = vst [vmem:[#allocation13] sm:$0xff] %v2120
    %2153 = vst [vmem:[#allocation13 + $0x8] sm:$0xff] %v2121
    %2154 = vst [vmem:[#allocation13 + $0x10] sm:$0xff] %v2122
    %2155 = vst [vmem:[#allocation13 + $0x18] sm:$0xff] %v2123
    %2156 = vst [vmem:[#allocation13 + $0x20] sm:$0xff] %v2124
    %2157 = vst [vmem:[#allocation13 + $0x28] sm:$0xff] %v2125
    %2158 = vst [vmem:[#allocation13 + $0x30] sm:$0xff] %v2126
    %2159 = vst [vmem:[#allocation13 + $0x38] sm:$0xff] %v2127
    %2160 = vst [vmem:[#allocation13 + $0x40] sm:$0xff] %v2128
    %2161 = vst [vmem:[#allocation13 + $0x48] sm:$0xff] %v2129
    %2162 = vst [vmem:[#allocation13 + $0x50] sm:$0xff] %v2130
    %2163 = vst [vmem:[#allocation13 + $0x58] sm:$0xff] %v2131
    %2164 = vst [vmem:[#allocation13 + $0x60] sm:$0xff] %v2132
    %2165 = vst [vmem:[#allocation13 + $0x68] sm:$0xff] %v2133
    %2166 = vst [vmem:[#allocation13 + $0x70] sm:$0xff] %v2134
    %2167 = vst [vmem:[#allocation13 + $0x78] sm:$0xff] %v2135
    // Predicated region
    $region86: #{tpu_custom_call.1} parent=1 // pred_check
      _
    $region87: #{tpu_custom_call.1} parent=1 // pred_check_branch
      %2169 = sbr.rel (0) target = $region89
    $region88: #{tpu_custom_call.1} parent=1 // pred_region
      %s2171 = ssub.s32 2048, 2048
      %2172 = vsyncadd [#allocation4], %s2171
      %s2173 = sshll.u32 [#allocation13], 4
      %s2174 = int_to_ptr.vmem [resolvable:$true] %s2173
      %2179 = dma.vmem_to_hbm [thread:$0]  %s2174, 2048, %s15, [#allocation4], 128, 128, 8
    $region89: #{tpu_custom_call.1} parent=1 // pred_fallthru
      _
    // Predicated region
    $region90: #{tpu_custom_call.1} parent=1 // pred_check
      _
    $region91: #{tpu_custom_call.1} parent=1 // pred_check_branch
      %2181 = sbr.rel (0) target = $region93
    $region92: #{tpu_custom_call.1} parent=1 // pred_region
      %2182 = dma.done [#allocation4], 2048
    $region93: #{tpu_custom_call.1} parent=1 // pred_fallthru
      _
    %2183 = vsyncpa [#allocation3], 1
    %2184 = vsyncpa [#allocation6], 1
    %2185 = vsyncpa [#allocation9], 1
    %2186 = vsyncpa [#allocation12], 1
    %2187 = vsyncpa [#allocation4], 1

</llo_original>
